<compile_context>
chip_gen: v5e
topology: v5e:2x2
jax: 0.10.0
libtpu: 0.0.40
codegen_flags: <defaults>
</compile_context>

<pallas_src>
import jax
import jax.numpy as jnp
import numpy as np
from jax.experimental import pallas as pl
from jax.experimental.pallas import tpu as pltpu  # noqa: F401  (TPU backend)


# ----------------------------------------------------------------------------
# Fused Pallas kernel: all layers + both directions + skip connection
# ----------------------------------------------------------------------------
def _make_bilstm_kernel(T, B, H, num_layers):
    """Build the fused kernel for static (T, B, H, num_layers)."""

    def kernel(*refs):
        x_ref = refs[0]                                   # (T, B, H)
        w_refs = refs[1:1 + num_layers]                   # (D_in+H, 8H) each
        b_refs = refs[1 + num_layers:1 + 2 * num_layers]  # (1, 8H) each
        out_ref, hn_ref, cn_ref = refs[1 + 2 * num_layers:]

        x = x_ref[...]                                    # resident in VMEM
        seq = x                                           # layer input (T,B,D_in)

        for l in range(num_layers):
            w = w_refs[l][...]                            # (D_in+H, 8H)
            b = b_refs[l][...]                            # (1, 8H)

            # rows [0:B) carry the forward direction, rows [B:2B) the backward
            h2 = jnp.zeros((2 * B, H), jnp.float32)
            c2 = jnp.zeros((2 * B, H), jnp.float32)
            hf = [None] * T
            hb = [None] * T

            for t in range(T):
                xf = seq[t]                               # fwd reads time t
                xb = seq[T - 1 - t]                       # bwd reads time T-1-t
                x2 = jnp.concatenate([xf, xb], axis=0)    # (2B, D_in)
                inp = jnp.concatenate([x2, h2], axis=-1)  # (2B, D_in+H)

                # one MXU matmul per timestep for BOTH directions
                gates = jnp.dot(inp, w,
                                preferred_element_type=jnp.float32) + b
                # fwd rows use cols [0,4H), bwd rows use cols [4H,8H)
                g2 = jnp.concatenate([gates[:B, :4 * H],
                                      gates[B:, 4 * H:]], axis=0)   # (2B,4H)

                # PyTorch gate order: i, f, g, o
                i = jax.nn.sigmoid(g2[:, 0 * H:1 * H])
                f = jax.nn.sigmoid(g2[:, 1 * H:2 * H])
                g = jnp.tanh(g2[:, 2 * H:3 * H])
                o = jax.nn.sigmoid(g2[:, 3 * H:4 * H])

                c2 = f * c2 + i * g
                h2 = o * jnp.tanh(c2)

                hf[t] = h2[:B]
                hb[T - 1 - t] = h2[B:]

            # final states (written once per layer; PyTorch order: fwd, rev)
            hn_ref[2 * l] = h2[:B]
            hn_ref[2 * l + 1] = h2[B:]
            cn_ref[2 * l] = c2[:B]
            cn_ref[2 * l + 1] = c2[B:]

            # next layer's input: [fwd_seq | bwd_seq]  -> (T, B, 2H)
            seq = jnp.concatenate([jnp.stack(hf, axis=0),
                                   jnp.stack(hb, axis=0)], axis=-1)

        # skip connection fused into the same kernel
        out_ref[...] = seq[..., :H] + seq[..., H:] + x

    return kernel


# ----------------------------------------------------------------------------
# BidrectionalLSTM.forward equivalent
# ----------------------------------------------------------------------------
def bidirectional_lstm_forward(inputs, params, num_layers):
    """inputs: (T, B, H). Returns (output, hn, cn) matching the PyTorch module."""
    T, B, H = inputs.shape

    # Host-side weight packing: per layer a single (D_in+H, 8H) matrix
    #   [ W_ih_f^T ; W_hh_f^T  |  W_ih_b^T ; W_hh_b^T ]
    # and a single (1, 8H) combined bias [b_f | b_b] with b = b_ih + b_hh.
    ws, bs = [], []
    for l in range(num_layers):
        p = params[l]
        w_f = jnp.concatenate([p["w_ih_f"].T, p["w_hh_f"].T], axis=0)
        w_b = jnp.concatenate([p["w_ih_b"].T, p["w_hh_b"].T], axis=0)
        ws.append(jnp.concatenate([w_f, w_b], axis=1))                 # (D_in+H, 8H)
        bs.append(jnp.concatenate([p["b_ih_f"] + p["b_hh_f"],
                                   p["b_ih_b"] + p["b_hh_b"]])[None, :])  # (1, 8H)

    kernel = _make_bilstm_kernel(T, B, H, num_layers)
    out, hn, cn = pl.pallas_call(
        kernel,
        out_shape=(jax.ShapeDtypeStruct((T, B, H), jnp.float32),
                   jax.ShapeDtypeStruct((2 * num_layers, B, H), jnp.float32),
                   jax.ShapeDtypeStruct((2 * num_layers, B, H), jnp.float32)),
    )(inputs, *ws, *bs)
    return out, hn, cn


# ----------------------------------------------------------------------------
# Pure-JAX reference (same math) for a correctness check
# ----------------------------------------------------------------------------
def _lstm_dir_ref(x, w_ih, w_hh, b_ih, b_hh):
    T, B, _ = x.shape
    H = w_hh.shape[1]
    h = jnp.zeros((B, H), jnp.float32)
    c = jnp.zeros((B, H), jnp.float32)
    hs = []
    for t in range(T):
        gates = x[t] @ w_ih.T + b_ih + h @ w_hh.T + b_hh
        i = jax.nn.sigmoid(gates[:, 0 * H:1 * H])
        f = jax.nn.sigmoid(gates[:, 1 * H:2 * H])
        g = jnp.tanh(gates[:, 2 * H:3 * H])
        o = jax.nn.sigmoid(gates[:, 3 * H:4 * H])
        c = f * c + i * g
        h = o * jnp.tanh(c)
        hs.append(h)
    return jnp.stack(hs), h, c


def _reference_forward(inputs, params, num_layers):
    T, B, H = inputs.shape
    layer_in = inputs
    hn_list, cn_list = [], []
    for l in range(num_layers):
        p = params[l]
        hf, hnf, cnf = _lstm_dir_ref(layer_in, p["w_ih_f"], p["w_hh_f"],
                                     p["b_ih_f"], p["b_hh_f"])
        hbr, hnb, cnb = _lstm_dir_ref(jnp.flip(layer_in, 0), p["w_ih_b"],
                                      p["w_hh_b"], p["b_ih_b"], p["b_hh_b"])
        hb = jnp.flip(hbr, 0)
        layer_in = jnp.concatenate([hf, hb], axis=-1)
        hn_list += [hnf, hnb]
        cn_list += [cnf, cnb]
    out = layer_in[:, :, :H] + layer_in[:, :, H:] + inputs
    return out, jnp.stack(hn_list, 0), jnp.stack(cn_list, 0)


# ----------------------------------------------------------------------------
# Deterministic parameter init (PyTorch LSTM default: U(-1/sqrt(H), 1/sqrt(H)))
# ----------------------------------------------------------------------------
def init_params(key, size, num_layers):
    stdv = 1.0 / np.sqrt(size)
    params = []
    for l in range(num_layers):
        d_in = size if l == 0 else 2 * size
        layer = {}
        for direction in ("f", "b"):
            key, k1, k2, k3, k4 = jax.random.split(key, 5)
            layer[f"w_ih_{direction}"] = jax.random.uniform(
                k1, (4 * size, d_in), jnp.float32, -stdv, stdv)
            layer[f"w_hh_{direction}"] = jax.random.uniform(
                k2, (4 * size, size), jnp.float32, -stdv, stdv)
            layer[f"b_ih_{direction}"] = jax.random.uniform(
                k3, (4 * size,), jnp.float32, -stdv, stdv)
            layer[f"b_hh_{direction}"] = jax.random.uniform(
                k4, (4 * size,), jnp.float32, -stdv, stdv)
        params.append(layer)
    return params


if __name__ == "__main__":
    SIZE = 32        # input size == hidden size (skip-connection constraint)
    LAYERS = 2
    SEQ = 8
    BATCH = 1        # module hardcodes batch_size = 1

    key = jax.random.PRNGKey(0)
    key, k_in = jax.random.split(key)
    inputs = jax.random.normal(k_in, (SEQ, BATCH, SIZE), jnp.float32)
    params = init_params(key, SIZE, LAYERS)

    fwd = jax.jit(bidirectional_lstm_forward, static_argnums=2)
    out, hn, cn = fwd(inputs, params, LAYERS)
    out = jax.block_until_ready(out)
    hn = jax.block_until_ready(hn)
    cn = jax.block_until_ready(cn)

    assert out.shape == (SEQ, BATCH, SIZE)
    assert hn.shape == (LAYERS * 2, BATCH, SIZE)
    assert cn.shape == (LAYERS * 2, BATCH, SIZE)

    # correctness check against pure-JAX reference
    out_r, hn_r, cn_r = _reference_forward(inputs, params, LAYERS)
    np.testing.assert_allclose(np.asarray(out), np.asarray(out_r), atol=2e-4, rtol=2e-4)
    np.testing.assert_allclose(np.asarray(hn), np.asarray(hn_r), atol=2e-4, rtol=2e-4)
    np.testing.assert_allclose(np.asarray(cn), np.asarray(cn_r), atol=2e-4, rtol=2e-4)

    print("KERNEL_OK")
</pallas_src>

<mosaic_0001>
module attributes {stable_mosaic.version = 11 : i64} {
  func.func @kernel(%arg0: memref<8x1x32xf32, #tpu.memory_space<vmem>>, %arg1: memref<64x256xf32, #tpu.memory_space<vmem>>, %arg2: memref<96x256xf32, #tpu.memory_space<vmem>>, %arg3: memref<1x256xf32, #tpu.memory_space<vmem>>, %arg4: memref<1x256xf32, #tpu.memory_space<vmem>>, %arg5: memref<8x1x32xf32, #tpu.memory_space<vmem>>, %arg6: memref<4x1x32xf32, #tpu.memory_space<vmem>>, %arg7: memref<4x1x32xf32, #tpu.memory_space<vmem>>) attributes {dimension_semantics = [], scalar_prefetch = 0 : i64, scratch_operands = 0 : i64, tpu.core_type = #tpu.core_type<tc>} {
    %c0 = arith.constant 0 : index
    %c0_0 = arith.constant 0 : index
    %c0_1 = arith.constant 0 : index
    %0 = vector.load %arg0[%c0, %c0_0, %c0_1] : memref<8x1x32xf32, #tpu.memory_space<vmem>>, vector<8x1x32xf32>
    %c0_2 = arith.constant 0 : index
    %c0_3 = arith.constant 0 : index
    %1 = vector.load %arg1[%c0_2, %c0_3] : memref<64x256xf32, #tpu.memory_space<vmem>>, vector<64x256xf32>
    %c0_4 = arith.constant 0 : index
    %c0_5 = arith.constant 0 : index
    %2 = vector.load %arg3[%c0_4, %c0_5] : memref<1x256xf32, #tpu.memory_space<vmem>>, vector<1x256xf32>
    %cst = arith.constant 0.000000e+00 : f32
    %3 = vector.broadcast %cst : f32 to vector<2x32xf32>
    %cst_6 = arith.constant 0.000000e+00 : f32
    %4 = vector.broadcast %cst_6 : f32 to vector<2x32xf32>
    %5 = vector.extract_strided_slice %0 {offsets = [0, 0, 0], sizes = [1, 1, 32], strides = [1, 1, 1]} : vector<8x1x32xf32> to vector<1x1x32xf32>
    %6 = vector.shape_cast %5 : vector<1x1x32xf32> to vector<1x32xf32>
    %7 = vector.extract_strided_slice %0 {offsets = [7, 0, 0], sizes = [1, 1, 32], strides = [1, 1, 1]} : vector<8x1x32xf32> to vector<1x1x32xf32>
    %8 = vector.shape_cast %7 : vector<1x1x32xf32> to vector<1x32xf32>
    %9 = tpu.concatenate %6, %8 in 0 : vector<1x32xf32>, vector<1x32xf32> -> vector<2x32xf32>
    %10 = tpu.concatenate %9, %3 in 1 : vector<2x32xf32>, vector<2x32xf32> -> vector<2x64xf32>
    %cst_7 = arith.constant dense<0.000000e+00> : vector<2x256xf32>
    %11 = tpu.matmul %10, %1, %cst_7 {dimension_numbers = #tpu.dot_dimension_numbers<[1], [0], [0], [1], [0, 0, 1, 1], [], []>} : vector<2x64xf32>, vector<64x256xf32>, vector<2x256xf32> -> vector<2x256xf32>
    %12 = vector.broadcast %2 : vector<1x256xf32> to vector<2x256xf32>
    %13 = arith.addf %11, %12 : vector<2x256xf32>
    %14 = vector.extract_strided_slice %13 {offsets = [0, 0], sizes = [1, 128], strides = [1, 1]} : vector<2x256xf32> to vector<1x128xf32>
    %15 = vector.extract_strided_slice %13 {offsets = [1, 128], sizes = [1, 128], strides = [1, 1]} : vector<2x256xf32> to vector<1x128xf32>
    %16 = tpu.concatenate %14, %15 in 0 : vector<1x128xf32>, vector<1x128xf32> -> vector<2x128xf32>
    %17 = vector.extract_strided_slice %16 {offsets = [0, 0], sizes = [2, 32], strides = [1, 1]} : vector<2x128xf32> to vector<2x32xf32>
    %18 = arith.negf %17 : vector<2x32xf32>
    %19 = math.exp %18 : vector<2x32xf32>
    %cst_8 = arith.constant 1.000000e+00 : f32
    %20 = vector.broadcast %cst_8 : f32 to vector<2x32xf32>
    %21 = arith.addf %20, %19 : vector<2x32xf32>
    %22 = arith.divf %20, %21 : vector<2x32xf32>
    %23 = vector.extract_strided_slice %16 {offsets = [0, 32], sizes = [2, 32], strides = [1, 1]} : vector<2x128xf32> to vector<2x32xf32>
    %24 = arith.negf %23 : vector<2x32xf32>
    %25 = math.exp %24 : vector<2x32xf32>
    %cst_9 = arith.constant 1.000000e+00 : f32
    %26 = vector.broadcast %cst_9 : f32 to vector<2x32xf32>
    %27 = arith.addf %26, %25 : vector<2x32xf32>
    %28 = arith.divf %26, %27 : vector<2x32xf32>
    %29 = vector.extract_strided_slice %16 {offsets = [0, 64], sizes = [2, 32], strides = [1, 1]} : vector<2x128xf32> to vector<2x32xf32>
    %30 = math.tanh %29 : vector<2x32xf32>
    %31 = vector.extract_strided_slice %16 {offsets = [0, 96], sizes = [2, 32], strides = [1, 1]} : vector<2x128xf32> to vector<2x32xf32>
    %32 = arith.negf %31 : vector<2x32xf32>
    %33 = math.exp %32 : vector<2x32xf32>
    %cst_10 = arith.constant 1.000000e+00 : f32
    %34 = vector.broadcast %cst_10 : f32 to vector<2x32xf32>
    %35 = arith.addf %34, %33 : vector<2x32xf32>
    %36 = arith.divf %34, %35 : vector<2x32xf32>
    %37 = arith.mulf %28, %4 : vector<2x32xf32>
    %38 = arith.mulf %22, %30 : vector<2x32xf32>
    %39 = arith.addf %37, %38 : vector<2x32xf32>
    %40 = math.tanh %39 : vector<2x32xf32>
    %41 = arith.mulf %36, %40 : vector<2x32xf32>
    %42 = vector.extract_strided_slice %41 {offsets = [0, 0], sizes = [1, 32], strides = [1, 1]} : vector<2x32xf32> to vector<1x32xf32>
    %43 = vector.extract_strided_slice %41 {offsets = [1, 0], sizes = [1, 32], strides = [1, 1]} : vector<2x32xf32> to vector<1x32xf32>
    %44 = vector.extract_strided_slice %0 {offsets = [1, 0, 0], sizes = [1, 1, 32], strides = [1, 1, 1]} : vector<8x1x32xf32> to vector<1x1x32xf32>
    %45 = vector.shape_cast %44 : vector<1x1x32xf32> to vector<1x32xf32>
    %46 = vector.extract_strided_slice %0 {offsets = [6, 0, 0], sizes = [1, 1, 32], strides = [1, 1, 1]} : vector<8x1x32xf32> to vector<1x1x32xf32>
    %47 = vector.shape_cast %46 : vector<1x1x32xf32> to vector<1x32xf32>
    %48 = tpu.concatenate %45, %47 in 0 : vector<1x32xf32>, vector<1x32xf32> -> vector<2x32xf32>
    %49 = tpu.concatenate %48, %41 in 1 : vector<2x32xf32>, vector<2x32xf32> -> vector<2x64xf32>
    %cst_11 = arith.constant dense<0.000000e+00> : vector<2x256xf32>
    %50 = tpu.matmul %49, %1, %cst_11 {dimension_numbers = #tpu.dot_dimension_numbers<[1], [0], [0], [1], [0, 0, 1, 1], [], []>} : vector<2x64xf32>, vector<64x256xf32>, vector<2x256xf32> -> vector<2x256xf32>
    %51 = vector.broadcast %2 : vector<1x256xf32> to vector<2x256xf32>
    %52 = arith.addf %50, %51 : vector<2x256xf32>
    %53 = vector.extract_strided_slice %52 {offsets = [0, 0], sizes = [1, 128], strides = [1, 1]} : vector<2x256xf32> to vector<1x128xf32>
    %54 = vector.extract_strided_slice %52 {offsets = [1, 128], sizes = [1, 128], strides = [1, 1]} : vector<2x256xf32> to vector<1x128xf32>
    %55 = tpu.concatenate %53, %54 in 0 : vector<1x128xf32>, vector<1x128xf32> -> vector<2x128xf32>
    %56 = vector.extract_strided_slice %55 {offsets = [0, 0], sizes = [2, 32], strides = [1, 1]} : vector<2x128xf32> to vector<2x32xf32>
    %57 = arith.negf %56 : vector<2x32xf32>
    %58 = math.exp %57 : vector<2x32xf32>
    %cst_12 = arith.constant 1.000000e+00 : f32
    %59 = vector.broadcast %cst_12 : f32 to vector<2x32xf32>
    %60 = arith.addf %59, %58 : vector<2x32xf32>
    %61 = arith.divf %59, %60 : vector<2x32xf32>
    %62 = vector.extract_strided_slice %55 {offsets = [0, 32], sizes = [2, 32], strides = [1, 1]} : vector<2x128xf32> to vector<2x32xf32>
    %63 = arith.negf %62 : vector<2x32xf32>
    %64 = math.exp %63 : vector<2x32xf32>
    %cst_13 = arith.constant 1.000000e+00 : f32
    %65 = vector.broadcast %cst_13 : f32 to vector<2x32xf32>
    %66 = arith.addf %65, %64 : vector<2x32xf32>
    %67 = arith.divf %65, %66 : vector<2x32xf32>
    %68 = vector.extract_strided_slice %55 {offsets = [0, 64], sizes = [2, 32], strides = [1, 1]} : vector<2x128xf32> to vector<2x32xf32>
    %69 = math.tanh %68 : vector<2x32xf32>
    %70 = vector.extract_strided_slice %55 {offsets = [0, 96], sizes = [2, 32], strides = [1, 1]} : vector<2x128xf32> to vector<2x32xf32>
    %71 = arith.negf %70 : vector<2x32xf32>
    %72 = math.exp %71 : vector<2x32xf32>
    %cst_14 = arith.constant 1.000000e+00 : f32
    %73 = vector.broadcast %cst_14 : f32 to vector<2x32xf32>
    %74 = arith.addf %73, %72 : vector<2x32xf32>
    %75 = arith.divf %73, %74 : vector<2x32xf32>
    %76 = arith.mulf %67, %39 : vector<2x32xf32>
    %77 = arith.mulf %61, %69 : vector<2x32xf32>
    %78 = arith.addf %76, %77 : vector<2x32xf32>
    %79 = math.tanh %78 : vector<2x32xf32>
    %80 = arith.mulf %75, %79 : vector<2x32xf32>
    %81 = vector.extract_strided_slice %80 {offsets = [0, 0], sizes = [1, 32], strides = [1, 1]} : vector<2x32xf32> to vector<1x32xf32>
    %82 = vector.extract_strided_slice %80 {offsets = [1, 0], sizes = [1, 32], strides = [1, 1]} : vector<2x32xf32> to vector<1x32xf32>
    %83 = vector.extract_strided_slice %0 {offsets = [2, 0, 0], sizes = [1, 1, 32], strides = [1, 1, 1]} : vector<8x1x32xf32> to vector<1x1x32xf32>
    %84 = vector.shape_cast %83 : vector<1x1x32xf32> to vector<1x32xf32>
    %85 = vector.extract_strided_slice %0 {offsets = [5, 0, 0], sizes = [1, 1, 32], strides = [1, 1, 1]} : vector<8x1x32xf32> to vector<1x1x32xf32>
    %86 = vector.shape_cast %85 : vector<1x1x32xf32> to vector<1x32xf32>
    %87 = tpu.concatenate %84, %86 in 0 : vector<1x32xf32>, vector<1x32xf32> -> vector<2x32xf32>
    %88 = tpu.concatenate %87, %80 in 1 : vector<2x32xf32>, vector<2x32xf32> -> vector<2x64xf32>
    %cst_15 = arith.constant dense<0.000000e+00> : vector<2x256xf32>
    %89 = tpu.matmul %88, %1, %cst_15 {dimension_numbers = #tpu.dot_dimension_numbers<[1], [0], [0], [1], [0, 0, 1, 1], [], []>} : vector<2x64xf32>, vector<64x256xf32>, vector<2x256xf32> -> vector<2x256xf32>
    %90 = vector.broadcast %2 : vector<1x256xf32> to vector<2x256xf32>
    %91 = arith.addf %89, %90 : vector<2x256xf32>
    %92 = vector.extract_strided_slice %91 {offsets = [0, 0], sizes = [1, 128], strides = [1, 1]} : vector<2x256xf32> to vector<1x128xf32>
    %93 = vector.extract_strided_slice %91 {offsets = [1, 128], sizes = [1, 128], strides = [1, 1]} : vector<2x256xf32> to vector<1x128xf32>
    %94 = tpu.concatenate %92, %93 in 0 : vector<1x128xf32>, vector<1x128xf32> -> vector<2x128xf32>
    %95 = vector.extract_strided_slice %94 {offsets = [0, 0], sizes = [2, 32], strides = [1, 1]} : vector<2x128xf32> to vector<2x32xf32>
    %96 = arith.negf %95 : vector<2x32xf32>
    %97 = math.exp %96 : vector<2x32xf32>
    %cst_16 = arith.constant 1.000000e+00 : f32
    %98 = vector.broadcast %cst_16 : f32 to vector<2x32xf32>
    %99 = arith.addf %98, %97 : vector<2x32xf32>
    %100 = arith.divf %98, %99 : vector<2x32xf32>
    %101 = vector.extract_strided_slice %94 {offsets = [0, 32], sizes = [2, 32], strides = [1, 1]} : vector<2x128xf32> to vector<2x32xf32>
    %102 = arith.negf %101 : vector<2x32xf32>
    %103 = math.exp %102 : vector<2x32xf32>
    %cst_17 = arith.constant 1.000000e+00 : f32
    %104 = vector.broadcast %cst_17 : f32 to vector<2x32xf32>
    %105 = arith.addf %104, %103 : vector<2x32xf32>
    %106 = arith.divf %104, %105 : vector<2x32xf32>
    %107 = vector.extract_strided_slice %94 {offsets = [0, 64], sizes = [2, 32], strides = [1, 1]} : vector<2x128xf32> to vector<2x32xf32>
    %108 = math.tanh %107 : vector<2x32xf32>
    %109 = vector.extract_strided_slice %94 {offsets = [0, 96], sizes = [2, 32], strides = [1, 1]} : vector<2x128xf32> to vector<2x32xf32>
    %110 = arith.negf %109 : vector<2x32xf32>
    %111 = math.exp %110 : vector<2x32xf32>
    %cst_18 = arith.constant 1.000000e+00 : f32
    %112 = vector.broadcast %cst_18 : f32 to vector<2x32xf32>
    %113 = arith.addf %112, %111 : vector<2x32xf32>
    %114 = arith.divf %112, %113 : vector<2x32xf32>
    %115 = arith.mulf %106, %78 : vector<2x32xf32>
    %116 = arith.mulf %100, %108 : vector<2x32xf32>
    %117 = arith.addf %115, %116 : vector<2x32xf32>
    %118 = math.tanh %117 : vector<2x32xf32>
    %119 = arith.mulf %114, %118 : vector<2x32xf32>
    %120 = vector.extract_strided_slice %119 {offsets = [0, 0], sizes = [1, 32], strides = [1, 1]} : vector<2x32xf32> to vector<1x32xf32>
    %121 = vector.extract_strided_slice %119 {offsets = [1, 0], sizes = [1, 32], strides = [1, 1]} : vector<2x32xf32> to vector<1x32xf32>
    %122 = vector.extract_strided_slice %0 {offsets = [3, 0, 0], sizes = [1, 1, 32], strides = [1, 1, 1]} : vector<8x1x32xf32> to vector<1x1x32xf32>
    %123 = vector.shape_cast %122 : vector<1x1x32xf32> to vector<1x32xf32>
    %124 = vector.extract_strided_slice %0 {offsets = [4, 0, 0], sizes = [1, 1, 32], strides = [1, 1, 1]} : vector<8x1x32xf32> to vector<1x1x32xf32>
    %125 = vector.shape_cast %124 : vector<1x1x32xf32> to vector<1x32xf32>
    %126 = tpu.concatenate %123, %125 in 0 : vector<1x32xf32>, vector<1x32xf32> -> vector<2x32xf32>
    %127 = tpu.concatenate %126, %119 in 1 : vector<2x32xf32>, vector<2x32xf32> -> vector<2x64xf32>
    %cst_19 = arith.constant dense<0.000000e+00> : vector<2x256xf32>
    %128 = tpu.matmul %127, %1, %cst_19 {dimension_numbers = #tpu.dot_dimension_numbers<[1], [0], [0], [1], [0, 0, 1, 1], [], []>} : vector<2x64xf32>, vector<64x256xf32>, vector<2x256xf32> -> vector<2x256xf32>
    %129 = vector.broadcast %2 : vector<1x256xf32> to vector<2x256xf32>
    %130 = arith.addf %128, %129 : vector<2x256xf32>
    %131 = vector.extract_strided_slice %130 {offsets = [0, 0], sizes = [1, 128], strides = [1, 1]} : vector<2x256xf32> to vector<1x128xf32>
    %132 = vector.extract_strided_slice %130 {offsets = [1, 128], sizes = [1, 128], strides = [1, 1]} : vector<2x256xf32> to vector<1x128xf32>
    %133 = tpu.concatenate %131, %132 in 0 : vector<1x128xf32>, vector<1x128xf32> -> vector<2x128xf32>
    %134 = vector.extract_strided_slice %133 {offsets = [0, 0], sizes = [2, 32], strides = [1, 1]} : vector<2x128xf32> to vector<2x32xf32>
    %135 = arith.negf %134 : vector<2x32xf32>
    %136 = math.exp %135 : vector<2x32xf32>
    %cst_20 = arith.constant 1.000000e+00 : f32
    %137 = vector.broadcast %cst_20 : f32 to vector<2x32xf32>
    %138 = arith.addf %137, %136 : vector<2x32xf32>
    %139 = arith.divf %137, %138 : vector<2x32xf32>
    %140 = vector.extract_strided_slice %133 {offsets = [0, 32], sizes = [2, 32], strides = [1, 1]} : vector<2x128xf32> to vector<2x32xf32>
    %141 = arith.negf %140 : vector<2x32xf32>
    %142 = math.exp %141 : vector<2x32xf32>
    %cst_21 = arith.constant 1.000000e+00 : f32
    %143 = vector.broadcast %cst_21 : f32 to vector<2x32xf32>
    %144 = arith.addf %143, %142 : vector<2x32xf32>
    %145 = arith.divf %143, %144 : vector<2x32xf32>
    %146 = vector.extract_strided_slice %133 {offsets = [0, 64], sizes = [2, 32], strides = [1, 1]} : vector<2x128xf32> to vector<2x32xf32>
    %147 = math.tanh %146 : vector<2x32xf32>
    %148 = vector.extract_strided_slice %133 {offsets = [0, 96], sizes = [2, 32], strides = [1, 1]} : vector<2x128xf32> to vector<2x32xf32>
    %149 = arith.negf %148 : vector<2x32xf32>
    %150 = math.exp %149 : vector<2x32xf32>
    %cst_22 = arith.constant 1.000000e+00 : f32
    %151 = vector.broadcast %cst_22 : f32 to vector<2x32xf32>
    %152 = arith.addf %151, %150 : vector<2x32xf32>
    %153 = arith.divf %151, %152 : vector<2x32xf32>
    %154 = arith.mulf %145, %117 : vector<2x32xf32>
    %155 = arith.mulf %139, %147 : vector<2x32xf32>
    %156 = arith.addf %154, %155 : vector<2x32xf32>
    %157 = math.tanh %156 : vector<2x32xf32>
    %158 = arith.mulf %153, %157 : vector<2x32xf32>
    %159 = vector.extract_strided_slice %158 {offsets = [0, 0], sizes = [1, 32], strides = [1, 1]} : vector<2x32xf32> to vector<1x32xf32>
    %160 = vector.extract_strided_slice %158 {offsets = [1, 0], sizes = [1, 32], strides = [1, 1]} : vector<2x32xf32> to vector<1x32xf32>
    %161 = vector.extract_strided_slice %0 {offsets = [4, 0, 0], sizes = [1, 1, 32], strides = [1, 1, 1]} : vector<8x1x32xf32> to vector<1x1x32xf32>
    %162 = vector.shape_cast %161 : vector<1x1x32xf32> to vector<1x32xf32>
    %163 = vector.extract_strided_slice %0 {offsets = [3, 0, 0], sizes = [1, 1, 32], strides = [1, 1, 1]} : vector<8x1x32xf32> to vector<1x1x32xf32>
    %164 = vector.shape_cast %163 : vector<1x1x32xf32> to vector<1x32xf32>
    %165 = tpu.concatenate %162, %164 in 0 : vector<1x32xf32>, vector<1x32xf32> -> vector<2x32xf32>
    %166 = tpu.concatenate %165, %158 in 1 : vector<2x32xf32>, vector<2x32xf32> -> vector<2x64xf32>
    %cst_23 = arith.constant dense<0.000000e+00> : vector<2x256xf32>
    %167 = tpu.matmul %166, %1, %cst_23 {dimension_numbers = #tpu.dot_dimension_numbers<[1], [0], [0], [1], [0, 0, 1, 1], [], []>} : vector<2x64xf32>, vector<64x256xf32>, vector<2x256xf32> -> vector<2x256xf32>
    %168 = vector.broadcast %2 : vector<1x256xf32> to vector<2x256xf32>
    %169 = arith.addf %167, %168 : vector<2x256xf32>
    %170 = vector.extract_strided_slice %169 {offsets = [0, 0], sizes = [1, 128], strides = [1, 1]} : vector<2x256xf32> to vector<1x128xf32>
    %171 = vector.extract_strided_slice %169 {offsets = [1, 128], sizes = [1, 128], strides = [1, 1]} : vector<2x256xf32> to vector<1x128xf32>
    %172 = tpu.concatenate %170, %171 in 0 : vector<1x128xf32>, vector<1x128xf32> -> vector<2x128xf32>
    %173 = vector.extract_strided_slice %172 {offsets = [0, 0], sizes = [2, 32], strides = [1, 1]} : vector<2x128xf32> to vector<2x32xf32>
    %174 = arith.negf %173 : vector<2x32xf32>
    %175 = math.exp %174 : vector<2x32xf32>
    %cst_24 = arith.constant 1.000000e+00 : f32
    %176 = vector.broadcast %cst_24 : f32 to vector<2x32xf32>
    %177 = arith.addf %176, %175 : vector<2x32xf32>
    %178 = arith.divf %176, %177 : vector<2x32xf32>
    %179 = vector.extract_strided_slice %172 {offsets = [0, 32], sizes = [2, 32], strides = [1, 1]} : vector<2x128xf32> to vector<2x32xf32>
    %180 = arith.negf %179 : vector<2x32xf32>
    %181 = math.exp %180 : vector<2x32xf32>
    %cst_25 = arith.constant 1.000000e+00 : f32
    %182 = vector.broadcast %cst_25 : f32 to vector<2x32xf32>
    %183 = arith.addf %182, %181 : vector<2x32xf32>
    %184 = arith.divf %182, %183 : vector<2x32xf32>
    %185 = vector.extract_strided_slice %172 {offsets = [0, 64], sizes = [2, 32], strides = [1, 1]} : vector<2x128xf32> to vector<2x32xf32>
    %186 = math.tanh %185 : vector<2x32xf32>
    %187 = vector.extract_strided_slice %172 {offsets = [0, 96], sizes = [2, 32], strides = [1, 1]} : vector<2x128xf32> to vector<2x32xf32>
    %188 = arith.negf %187 : vector<2x32xf32>
    %189 = math.exp %188 : vector<2x32xf32>
    %cst_26 = arith.constant 1.000000e+00 : f32
    %190 = vector.broadcast %cst_26 : f32 to vector<2x32xf32>
    %191 = arith.addf %190, %189 : vector<2x32xf32>
    %192 = arith.divf %190, %191 : vector<2x32xf32>
    %193 = arith.mulf %184, %156 : vector<2x32xf32>
    %194 = arith.mulf %178, %186 : vector<2x32xf32>
    %195 = arith.addf %193, %194 : vector<2x32xf32>
    %196 = math.tanh %195 : vector<2x32xf32>
    %197 = arith.mulf %192, %196 : vector<2x32xf32>
    %198 = vector.extract_strided_slice %197 {offsets = [0, 0], sizes = [1, 32], strides = [1, 1]} : vector<2x32xf32> to vector<1x32xf32>
    %199 = vector.extract_strided_slice %197 {offsets = [1, 0], sizes = [1, 32], strides = [1, 1]} : vector<2x32xf32> to vector<1x32xf32>
    %200 = vector.extract_strided_slice %0 {offsets = [5, 0, 0], sizes = [1, 1, 32], strides = [1, 1, 1]} : vector<8x1x32xf32> to vector<1x1x32xf32>
    %201 = vector.shape_cast %200 : vector<1x1x32xf32> to vector<1x32xf32>
    %202 = vector.extract_strided_slice %0 {offsets = [2, 0, 0], sizes = [1, 1, 32], strides = [1, 1, 1]} : vector<8x1x32xf32> to vector<1x1x32xf32>
    %203 = vector.shape_cast %202 : vector<1x1x32xf32> to vector<1x32xf32>
    %204 = tpu.concatenate %201, %203 in 0 : vector<1x32xf32>, vector<1x32xf32> -> vector<2x32xf32>
    %205 = tpu.concatenate %204, %197 in 1 : vector<2x32xf32>, vector<2x32xf32> -> vector<2x64xf32>
    %cst_27 = arith.constant dense<0.000000e+00> : vector<2x256xf32>
    %206 = tpu.matmul %205, %1, %cst_27 {dimension_numbers = #tpu.dot_dimension_numbers<[1], [0], [0], [1], [0, 0, 1, 1], [], []>} : vector<2x64xf32>, vector<64x256xf32>, vector<2x256xf32> -> vector<2x256xf32>
    %207 = vector.broadcast %2 : vector<1x256xf32> to vector<2x256xf32>
    %208 = arith.addf %206, %207 : vector<2x256xf32>
    %209 = vector.extract_strided_slice %208 {offsets = [0, 0], sizes = [1, 128], strides = [1, 1]} : vector<2x256xf32> to vector<1x128xf32>
    %210 = vector.extract_strided_slice %208 {offsets = [1, 128], sizes = [1, 128], strides = [1, 1]} : vector<2x256xf32> to vector<1x128xf32>
    %211 = tpu.concatenate %209, %210 in 0 : vector<1x128xf32>, vector<1x128xf32> -> vector<2x128xf32>
    %212 = vector.extract_strided_slice %211 {offsets = [0, 0], sizes = [2, 32], strides = [1, 1]} : vector<2x128xf32> to vector<2x32xf32>
    %213 = arith.negf %212 : vector<2x32xf32>
    %214 = math.exp %213 : vector<2x32xf32>
    %cst_28 = arith.constant 1.000000e+00 : f32
    %215 = vector.broadcast %cst_28 : f32 to vector<2x32xf32>
    %216 = arith.addf %215, %214 : vector<2x32xf32>
    %217 = arith.divf %215, %216 : vector<2x32xf32>
    %218 = vector.extract_strided_slice %211 {offsets = [0, 32], sizes = [2, 32], strides = [1, 1]} : vector<2x128xf32> to vector<2x32xf32>
    %219 = arith.negf %218 : vector<2x32xf32>
    %220 = math.exp %219 : vector<2x32xf32>
    %cst_29 = arith.constant 1.000000e+00 : f32
    %221 = vector.broadcast %cst_29 : f32 to vector<2x32xf32>
    %222 = arith.addf %221, %220 : vector<2x32xf32>
    %223 = arith.divf %221, %222 : vector<2x32xf32>
    %224 = vector.extract_strided_slice %211 {offsets = [0, 64], sizes = [2, 32], strides = [1, 1]} : vector<2x128xf32> to vector<2x32xf32>
    %225 = math.tanh %224 : vector<2x32xf32>
    %226 = vector.extract_strided_slice %211 {offsets = [0, 96], sizes = [2, 32], strides = [1, 1]} : vector<2x128xf32> to vector<2x32xf32>
    %227 = arith.negf %226 : vector<2x32xf32>
    %228 = math.exp %227 : vector<2x32xf32>
    %cst_30 = arith.constant 1.000000e+00 : f32
    %229 = vector.broadcast %cst_30 : f32 to vector<2x32xf32>
    %230 = arith.addf %229, %228 : vector<2x32xf32>
    %231 = arith.divf %229, %230 : vector<2x32xf32>
    %232 = arith.mulf %223, %195 : vector<2x32xf32>
    %233 = arith.mulf %217, %225 : vector<2x32xf32>
    %234 = arith.addf %232, %233 : vector<2x32xf32>
    %235 = math.tanh %234 : vector<2x32xf32>
    %236 = arith.mulf %231, %235 : vector<2x32xf32>
    %237 = vector.extract_strided_slice %236 {offsets = [0, 0], sizes = [1, 32], strides = [1, 1]} : vector<2x32xf32> to vector<1x32xf32>
    %238 = vector.extract_strided_slice %236 {offsets = [1, 0], sizes = [1, 32], strides = [1, 1]} : vector<2x32xf32> to vector<1x32xf32>
    %239 = vector.extract_strided_slice %0 {offsets = [6, 0, 0], sizes = [1, 1, 32], strides = [1, 1, 1]} : vector<8x1x32xf32> to vector<1x1x32xf32>
    %240 = vector.shape_cast %239 : vector<1x1x32xf32> to vector<1x32xf32>
    %241 = vector.extract_strided_slice %0 {offsets = [1, 0, 0], sizes = [1, 1, 32], strides = [1, 1, 1]} : vector<8x1x32xf32> to vector<1x1x32xf32>
    %242 = vector.shape_cast %241 : vector<1x1x32xf32> to vector<1x32xf32>
    %243 = tpu.concatenate %240, %242 in 0 : vector<1x32xf32>, vector<1x32xf32> -> vector<2x32xf32>
    %244 = tpu.concatenate %243, %236 in 1 : vector<2x32xf32>, vector<2x32xf32> -> vector<2x64xf32>
    %cst_31 = arith.constant dense<0.000000e+00> : vector<2x256xf32>
    %245 = tpu.matmul %244, %1, %cst_31 {dimension_numbers = #tpu.dot_dimension_numbers<[1], [0], [0], [1], [0, 0, 1, 1], [], []>} : vector<2x64xf32>, vector<64x256xf32>, vector<2x256xf32> -> vector<2x256xf32>
    %246 = vector.broadcast %2 : vector<1x256xf32> to vector<2x256xf32>
    %247 = arith.addf %245, %246 : vector<2x256xf32>
    %248 = vector.extract_strided_slice %247 {offsets = [0, 0], sizes = [1, 128], strides = [1, 1]} : vector<2x256xf32> to vector<1x128xf32>
    %249 = vector.extract_strided_slice %247 {offsets = [1, 128], sizes = [1, 128], strides = [1, 1]} : vector<2x256xf32> to vector<1x128xf32>
    %250 = tpu.concatenate %248, %249 in 0 : vector<1x128xf32>, vector<1x128xf32> -> vector<2x128xf32>
    %251 = vector.extract_strided_slice %250 {offsets = [0, 0], sizes = [2, 32], strides = [1, 1]} : vector<2x128xf32> to vector<2x32xf32>
    %252 = arith.negf %251 : vector<2x32xf32>
    %253 = math.exp %252 : vector<2x32xf32>
    %cst_32 = arith.constant 1.000000e+00 : f32
    %254 = vector.broadcast %cst_32 : f32 to vector<2x32xf32>
    %255 = arith.addf %254, %253 : vector<2x32xf32>
    %256 = arith.divf %254, %255 : vector<2x32xf32>
    %257 = vector.extract_strided_slice %250 {offsets = [0, 32], sizes = [2, 32], strides = [1, 1]} : vector<2x128xf32> to vector<2x32xf32>
    %258 = arith.negf %257 : vector<2x32xf32>
    %259 = math.exp %258 : vector<2x32xf32>
    %cst_33 = arith.constant 1.000000e+00 : f32
    %260 = vector.broadcast %cst_33 : f32 to vector<2x32xf32>
    %261 = arith.addf %260, %259 : vector<2x32xf32>
    %262 = arith.divf %260, %261 : vector<2x32xf32>
    %263 = vector.extract_strided_slice %250 {offsets = [0, 64], sizes = [2, 32], strides = [1, 1]} : vector<2x128xf32> to vector<2x32xf32>
    %264 = math.tanh %263 : vector<2x32xf32>
    %265 = vector.extract_strided_slice %250 {offsets = [0, 96], sizes = [2, 32], strides = [1, 1]} : vector<2x128xf32> to vector<2x32xf32>
    %266 = arith.negf %265 : vector<2x32xf32>
    %267 = math.exp %266 : vector<2x32xf32>
    %cst_34 = arith.constant 1.000000e+00 : f32
    %268 = vector.broadcast %cst_34 : f32 to vector<2x32xf32>
    %269 = arith.addf %268, %267 : vector<2x32xf32>
    %270 = arith.divf %268, %269 : vector<2x32xf32>
    %271 = arith.mulf %262, %234 : vector<2x32xf32>
    %272 = arith.mulf %256, %264 : vector<2x32xf32>
    %273 = arith.addf %271, %272 : vector<2x32xf32>
    %274 = math.tanh %273 : vector<2x32xf32>
    %275 = arith.mulf %270, %274 : vector<2x32xf32>
    %276 = vector.extract_strided_slice %275 {offsets = [0, 0], sizes = [1, 32], strides = [1, 1]} : vector<2x32xf32> to vector<1x32xf32>
    %277 = vector.extract_strided_slice %275 {offsets = [1, 0], sizes = [1, 32], strides = [1, 1]} : vector<2x32xf32> to vector<1x32xf32>
    %278 = vector.extract_strided_slice %0 {offsets = [7, 0, 0], sizes = [1, 1, 32], strides = [1, 1, 1]} : vector<8x1x32xf32> to vector<1x1x32xf32>
    %279 = vector.shape_cast %278 : vector<1x1x32xf32> to vector<1x32xf32>
    %280 = vector.extract_strided_slice %0 {offsets = [0, 0, 0], sizes = [1, 1, 32], strides = [1, 1, 1]} : vector<8x1x32xf32> to vector<1x1x32xf32>
    %281 = vector.shape_cast %280 : vector<1x1x32xf32> to vector<1x32xf32>
    %282 = tpu.concatenate %279, %281 in 0 : vector<1x32xf32>, vector<1x32xf32> -> vector<2x32xf32>
    %283 = tpu.concatenate %282, %275 in 1 : vector<2x32xf32>, vector<2x32xf32> -> vector<2x64xf32>
    %cst_35 = arith.constant dense<0.000000e+00> : vector<2x256xf32>
    %284 = tpu.matmul %283, %1, %cst_35 {dimension_numbers = #tpu.dot_dimension_numbers<[1], [0], [0], [1], [0, 0, 1, 1], [], []>} : vector<2x64xf32>, vector<64x256xf32>, vector<2x256xf32> -> vector<2x256xf32>
    %285 = vector.broadcast %2 : vector<1x256xf32> to vector<2x256xf32>
    %286 = arith.addf %284, %285 : vector<2x256xf32>
    %287 = vector.extract_strided_slice %286 {offsets = [0, 0], sizes = [1, 128], strides = [1, 1]} : vector<2x256xf32> to vector<1x128xf32>
    %288 = vector.extract_strided_slice %286 {offsets = [1, 128], sizes = [1, 128], strides = [1, 1]} : vector<2x256xf32> to vector<1x128xf32>
    %289 = tpu.concatenate %287, %288 in 0 : vector<1x128xf32>, vector<1x128xf32> -> vector<2x128xf32>
    %290 = vector.extract_strided_slice %289 {offsets = [0, 0], sizes = [2, 32], strides = [1, 1]} : vector<2x128xf32> to vector<2x32xf32>
    %291 = arith.negf %290 : vector<2x32xf32>
    %292 = math.exp %291 : vector<2x32xf32>
    %cst_36 = arith.constant 1.000000e+00 : f32
    %293 = vector.broadcast %cst_36 : f32 to vector<2x32xf32>
    %294 = arith.addf %293, %292 : vector<2x32xf32>
    %295 = arith.divf %293, %294 : vector<2x32xf32>
    %296 = vector.extract_strided_slice %289 {offsets = [0, 32], sizes = [2, 32], strides = [1, 1]} : vector<2x128xf32> to vector<2x32xf32>
    %297 = arith.negf %296 : vector<2x32xf32>
    %298 = math.exp %297 : vector<2x32xf32>
    %cst_37 = arith.constant 1.000000e+00 : f32
    %299 = vector.broadcast %cst_37 : f32 to vector<2x32xf32>
    %300 = arith.addf %299, %298 : vector<2x32xf32>
    %301 = arith.divf %299, %300 : vector<2x32xf32>
    %302 = vector.extract_strided_slice %289 {offsets = [0, 64], sizes = [2, 32], strides = [1, 1]} : vector<2x128xf32> to vector<2x32xf32>
    %303 = math.tanh %302 : vector<2x32xf32>
    %304 = vector.extract_strided_slice %289 {offsets = [0, 96], sizes = [2, 32], strides = [1, 1]} : vector<2x128xf32> to vector<2x32xf32>
    %305 = arith.negf %304 : vector<2x32xf32>
    %306 = math.exp %305 : vector<2x32xf32>
    %cst_38 = arith.constant 1.000000e+00 : f32
    %307 = vector.broadcast %cst_38 : f32 to vector<2x32xf32>
    %308 = arith.addf %307, %306 : vector<2x32xf32>
    %309 = arith.divf %307, %308 : vector<2x32xf32>
    %310 = arith.mulf %301, %273 : vector<2x32xf32>
    %311 = arith.mulf %295, %303 : vector<2x32xf32>
    %312 = arith.addf %310, %311 : vector<2x32xf32>
    %313 = math.tanh %312 : vector<2x32xf32>
    %314 = arith.mulf %309, %313 : vector<2x32xf32>
    %315 = vector.extract_strided_slice %314 {offsets = [0, 0], sizes = [1, 32], strides = [1, 1]} : vector<2x32xf32> to vector<1x32xf32>
    %316 = vector.extract_strided_slice %314 {offsets = [1, 0], sizes = [1, 32], strides = [1, 1]} : vector<2x32xf32> to vector<1x32xf32>
    %317 = vector.extract_strided_slice %314 {offsets = [0, 0], sizes = [1, 32], strides = [1, 1]} : vector<2x32xf32> to vector<1x32xf32>
    %c0_39 = arith.constant 0 : index
    %c0_40 = arith.constant 0 : index
    %c0_41 = arith.constant 0 : index
    %318 = vector.load %arg6[%c0_39, %c0_40, %c0_41] : memref<4x1x32xf32, #tpu.memory_space<vmem>>, vector<1x1x32xf32>
    %319 = vector.shape_cast %318 : vector<1x1x32xf32> to vector<1x32xf32>
    %320 = vector.shape_cast %317 : vector<1x32xf32> to vector<1x1x32xf32>
    tpu.vector_store %arg6[%c0_39, %c0_40, %c0_41], %320 {strides = array<i32>} : memref<4x1x32xf32, #tpu.memory_space<vmem>>, vector<1x1x32xf32>,
    %321 = vector.extract_strided_slice %314 {offsets = [1, 0], sizes = [1, 32], strides = [1, 1]} : vector<2x32xf32> to vector<1x32xf32>
    %c1 = arith.constant 1 : index
    %c0_42 = arith.constant 0 : index
    %c0_43 = arith.constant 0 : index
    %322 = vector.load %arg6[%c1, %c0_42, %c0_43] : memref<4x1x32xf32, #tpu.memory_space<vmem>>, vector<1x1x32xf32>
    %323 = vector.shape_cast %322 : vector<1x1x32xf32> to vector<1x32xf32>
    %324 = vector.shape_cast %321 : vector<1x32xf32> to vector<1x1x32xf32>
    tpu.vector_store %arg6[%c1, %c0_42, %c0_43], %324 {strides = array<i32>} : memref<4x1x32xf32, #tpu.memory_space<vmem>>, vector<1x1x32xf32>,
    %325 = vector.extract_strided_slice %312 {offsets = [0, 0], sizes = [1, 32], strides = [1, 1]} : vector<2x32xf32> to vector<1x32xf32>
    %c0_44 = arith.constant 0 : index
    %c0_45 = arith.constant 0 : index
    %c0_46 = arith.constant 0 : index
    %326 = vector.load %arg7[%c0_44, %c0_45, %c0_46] : memref<4x1x32xf32, #tpu.memory_space<vmem>>, vector<1x1x32xf32>
    %327 = vector.shape_cast %326 : vector<1x1x32xf32> to vector<1x32xf32>
    %328 = vector.shape_cast %325 : vector<1x32xf32> to vector<1x1x32xf32>
    tpu.vector_store %arg7[%c0_44, %c0_45, %c0_46], %328 {strides = array<i32>} : memref<4x1x32xf32, #tpu.memory_space<vmem>>, vector<1x1x32xf32>,
    %329 = vector.extract_strided_slice %312 {offsets = [1, 0], sizes = [1, 32], strides = [1, 1]} : vector<2x32xf32> to vector<1x32xf32>
    %c1_47 = arith.constant 1 : index
    %c0_48 = arith.constant 0 : index
    %c0_49 = arith.constant 0 : index
    %330 = vector.load %arg7[%c1_47, %c0_48, %c0_49] : memref<4x1x32xf32, #tpu.memory_space<vmem>>, vector<1x1x32xf32>
    %331 = vector.shape_cast %330 : vector<1x1x32xf32> to vector<1x32xf32>
    %332 = vector.shape_cast %329 : vector<1x32xf32> to vector<1x1x32xf32>
    tpu.vector_store %arg7[%c1_47, %c0_48, %c0_49], %332 {strides = array<i32>} : memref<4x1x32xf32, #tpu.memory_space<vmem>>, vector<1x1x32xf32>,
    %333 = vector.shape_cast %42 : vector<1x32xf32> to vector<1x1x32xf32>
    %334 = vector.shape_cast %81 : vector<1x32xf32> to vector<1x1x32xf32>
    %335 = vector.shape_cast %120 : vector<1x32xf32> to vector<1x1x32xf32>
    %336 = vector.shape_cast %159 : vector<1x32xf32> to vector<1x1x32xf32>
    %337 = vector.shape_cast %198 : vector<1x32xf32> to vector<1x1x32xf32>
    %338 = vector.shape_cast %237 : vector<1x32xf32> to vector<1x1x32xf32>
    %339 = vector.shape_cast %276 : vector<1x32xf32> to vector<1x1x32xf32>
    %340 = vector.shape_cast %315 : vector<1x32xf32> to vector<1x1x32xf32>
    %341 = tpu.concatenate %333, %334, %335, %336, %337, %338, %339, %340 in 0 : vector<1x1x32xf32>, vector<1x1x32xf32>, vector<1x1x32xf32>, vector<1x1x32xf32>, vector<1x1x32xf32>, vector<1x1x32xf32>, vector<1x1x32xf32>, vector<1x1x32xf32> -> vector<8x1x32xf32>
    %342 = vector.shape_cast %316 : vector<1x32xf32> to vector<1x1x32xf32>
    %343 = vector.shape_cast %277 : vector<1x32xf32> to vector<1x1x32xf32>
    %344 = vector.shape_cast %238 : vector<1x32xf32> to vector<1x1x32xf32>
    %345 = vector.shape_cast %199 : vector<1x32xf32> to vector<1x1x32xf32>
    %346 = vector.shape_cast %160 : vector<1x32xf32> to vector<1x1x32xf32>
    %347 = vector.shape_cast %121 : vector<1x32xf32> to vector<1x1x32xf32>
    %348 = vector.shape_cast %82 : vector<1x32xf32> to vector<1x1x32xf32>
    %349 = vector.shape_cast %43 : vector<1x32xf32> to vector<1x1x32xf32>
    %350 = tpu.concatenate %342, %343, %344, %345, %346, %347, %348, %349 in 0 : vector<1x1x32xf32>, vector<1x1x32xf32>, vector<1x1x32xf32>, vector<1x1x32xf32>, vector<1x1x32xf32>, vector<1x1x32xf32>, vector<1x1x32xf32>, vector<1x1x32xf32> -> vector<8x1x32xf32>
    %351 = tpu.concatenate %341, %350 in 2 : vector<8x1x32xf32>, vector<8x1x32xf32> -> vector<8x1x64xf32>
    %c0_50 = arith.constant 0 : index
    %c0_51 = arith.constant 0 : index
    %352 = vector.load %arg2[%c0_50, %c0_51] : memref<96x256xf32, #tpu.memory_space<vmem>>, vector<96x256xf32>
    %c0_52 = arith.constant 0 : index
    %c0_53 = arith.constant 0 : index
    %353 = vector.load %arg4[%c0_52, %c0_53] : memref<1x256xf32, #tpu.memory_space<vmem>>, vector<1x256xf32>
    %cst_54 = arith.constant 0.000000e+00 : f32
    %354 = vector.broadcast %cst_54 : f32 to vector<2x32xf32>
    %cst_55 = arith.constant 0.000000e+00 : f32
    %355 = vector.broadcast %cst_55 : f32 to vector<2x32xf32>
    %356 = vector.extract_strided_slice %351 {offsets = [0, 0, 0], sizes = [1, 1, 64], strides = [1, 1, 1]} : vector<8x1x64xf32> to vector<1x1x64xf32>
    %357 = vector.shape_cast %356 : vector<1x1x64xf32> to vector<1x64xf32>
    %358 = vector.extract_strided_slice %351 {offsets = [7, 0, 0], sizes = [1, 1, 64], strides = [1, 1, 1]} : vector<8x1x64xf32> to vector<1x1x64xf32>
    %359 = vector.shape_cast %358 : vector<1x1x64xf32> to vector<1x64xf32>
    %360 = tpu.concatenate %357, %359 in 0 : vector<1x64xf32>, vector<1x64xf32> -> vector<2x64xf32>
    %361 = tpu.concatenate %360, %354 in 1 : vector<2x64xf32>, vector<2x32xf32> -> vector<2x96xf32>
    %cst_56 = arith.constant dense<0.000000e+00> : vector<2x256xf32>
    %362 = tpu.matmul %361, %352, %cst_56 {dimension_numbers = #tpu.dot_dimension_numbers<[1], [0], [0], [1], [0, 0, 1, 1], [], []>} : vector<2x96xf32>, vector<96x256xf32>, vector<2x256xf32> -> vector<2x256xf32>
    %363 = vector.broadcast %353 : vector<1x256xf32> to vector<2x256xf32>
    %364 = arith.addf %362, %363 : vector<2x256xf32>
    %365 = vector.extract_strided_slice %364 {offsets = [0, 0], sizes = [1, 128], strides = [1, 1]} : vector<2x256xf32> to vector<1x128xf32>
    %366 = vector.extract_strided_slice %364 {offsets = [1, 128], sizes = [1, 128], strides = [1, 1]} : vector<2x256xf32> to vector<1x128xf32>
    %367 = tpu.concatenate %365, %366 in 0 : vector<1x128xf32>, vector<1x128xf32> -> vector<2x128xf32>
    %368 = vector.extract_strided_slice %367 {offsets = [0, 0], sizes = [2, 32], strides = [1, 1]} : vector<2x128xf32> to vector<2x32xf32>
    %369 = arith.negf %368 : vector<2x32xf32>
    %370 = math.exp %369 : vector<2x32xf32>
    %cst_57 = arith.constant 1.000000e+00 : f32
    %371 = vector.broadcast %cst_57 : f32 to vector<2x32xf32>
    %372 = arith.addf %371, %370 : vector<2x32xf32>
    %373 = arith.divf %371, %372 : vector<2x32xf32>
    %374 = vector.extract_strided_slice %367 {offsets = [0, 32], sizes = [2, 32], strides = [1, 1]} : vector<2x128xf32> to vector<2x32xf32>
    %375 = arith.negf %374 : vector<2x32xf32>
    %376 = math.exp %375 : vector<2x32xf32>
    %cst_58 = arith.constant 1.000000e+00 : f32
    %377 = vector.broadcast %cst_58 : f32 to vector<2x32xf32>
    %378 = arith.addf %377, %376 : vector<2x32xf32>
    %379 = arith.divf %377, %378 : vector<2x32xf32>
    %380 = vector.extract_strided_slice %367 {offsets = [0, 64], sizes = [2, 32], strides = [1, 1]} : vector<2x128xf32> to vector<2x32xf32>
    %381 = math.tanh %380 : vector<2x32xf32>
    %382 = vector.extract_strided_slice %367 {offsets = [0, 96], sizes = [2, 32], strides = [1, 1]} : vector<2x128xf32> to vector<2x32xf32>
    %383 = arith.negf %382 : vector<2x32xf32>
    %384 = math.exp %383 : vector<2x32xf32>
    %cst_59 = arith.constant 1.000000e+00 : f32
    %385 = vector.broadcast %cst_59 : f32 to vector<2x32xf32>
    %386 = arith.addf %385, %384 : vector<2x32xf32>
    %387 = arith.divf %385, %386 : vector<2x32xf32>
    %388 = arith.mulf %379, %355 : vector<2x32xf32>
    %389 = arith.mulf %373, %381 : vector<2x32xf32>
    %390 = arith.addf %388, %389 : vector<2x32xf32>
    %391 = math.tanh %390 : vector<2x32xf32>
    %392 = arith.mulf %387, %391 : vector<2x32xf32>
    %393 = vector.extract_strided_slice %392 {offsets = [0, 0], sizes = [1, 32], strides = [1, 1]} : vector<2x32xf32> to vector<1x32xf32>
    %394 = vector.extract_strided_slice %392 {offsets = [1, 0], sizes = [1, 32], strides = [1, 1]} : vector<2x32xf32> to vector<1x32xf32>
    %395 = vector.extract_strided_slice %351 {offsets = [1, 0, 0], sizes = [1, 1, 64], strides = [1, 1, 1]} : vector<8x1x64xf32> to vector<1x1x64xf32>
    %396 = vector.shape_cast %395 : vector<1x1x64xf32> to vector<1x64xf32>
    %397 = vector.extract_strided_slice %351 {offsets = [6, 0, 0], sizes = [1, 1, 64], strides = [1, 1, 1]} : vector<8x1x64xf32> to vector<1x1x64xf32>
    %398 = vector.shape_cast %397 : vector<1x1x64xf32> to vector<1x64xf32>
    %399 = tpu.concatenate %396, %398 in 0 : vector<1x64xf32>, vector<1x64xf32> -> vector<2x64xf32>
    %400 = tpu.concatenate %399, %392 in 1 : vector<2x64xf32>, vector<2x32xf32> -> vector<2x96xf32>
    %cst_60 = arith.constant dense<0.000000e+00> : vector<2x256xf32>
    %401 = tpu.matmul %400, %352, %cst_60 {dimension_numbers = #tpu.dot_dimension_numbers<[1], [0], [0], [1], [0, 0, 1, 1], [], []>} : vector<2x96xf32>, vector<96x256xf32>, vector<2x256xf32> -> vector<2x256xf32>
    %402 = vector.broadcast %353 : vector<1x256xf32> to vector<2x256xf32>
    %403 = arith.addf %401, %402 : vector<2x256xf32>
    %404 = vector.extract_strided_slice %403 {offsets = [0, 0], sizes = [1, 128], strides = [1, 1]} : vector<2x256xf32> to vector<1x128xf32>
    %405 = vector.extract_strided_slice %403 {offsets = [1, 128], sizes = [1, 128], strides = [1, 1]} : vector<2x256xf32> to vector<1x128xf32>
    %406 = tpu.concatenate %404, %405 in 0 : vector<1x128xf32>, vector<1x128xf32> -> vector<2x128xf32>
    %407 = vector.extract_strided_slice %406 {offsets = [0, 0], sizes = [2, 32], strides = [1, 1]} : vector<2x128xf32> to vector<2x32xf32>
    %408 = arith.negf %407 : vector<2x32xf32>
    %409 = math.exp %408 : vector<2x32xf32>
    %cst_61 = arith.constant 1.000000e+00 : f32
    %410 = vector.broadcast %cst_61 : f32 to vector<2x32xf32>
    %411 = arith.addf %410, %409 : vector<2x32xf32>
    %412 = arith.divf %410, %411 : vector<2x32xf32>
    %413 = vector.extract_strided_slice %406 {offsets = [0, 32], sizes = [2, 32], strides = [1, 1]} : vector<2x128xf32> to vector<2x32xf32>
    %414 = arith.negf %413 : vector<2x32xf32>
    %415 = math.exp %414 : vector<2x32xf32>
    %cst_62 = arith.constant 1.000000e+00 : f32
    %416 = vector.broadcast %cst_62 : f32 to vector<2x32xf32>
    %417 = arith.addf %416, %415 : vector<2x32xf32>
    %418 = arith.divf %416, %417 : vector<2x32xf32>
    %419 = vector.extract_strided_slice %406 {offsets = [0, 64], sizes = [2, 32], strides = [1, 1]} : vector<2x128xf32> to vector<2x32xf32>
    %420 = math.tanh %419 : vector<2x32xf32>
    %421 = vector.extract_strided_slice %406 {offsets = [0, 96], sizes = [2, 32], strides = [1, 1]} : vector<2x128xf32> to vector<2x32xf32>
    %422 = arith.negf %421 : vector<2x32xf32>
    %423 = math.exp %422 : vector<2x32xf32>
    %cst_63 = arith.constant 1.000000e+00 : f32
    %424 = vector.broadcast %cst_63 : f32 to vector<2x32xf32>
    %425 = arith.addf %424, %423 : vector<2x32xf32>
    %426 = arith.divf %424, %425 : vector<2x32xf32>
    %427 = arith.mulf %418, %390 : vector<2x32xf32>
    %428 = arith.mulf %412, %420 : vector<2x32xf32>
    %429 = arith.addf %427, %428 : vector<2x32xf32>
    %430 = math.tanh %429 : vector<2x32xf32>
    %431 = arith.mulf %426, %430 : vector<2x32xf32>
    %432 = vector.extract_strided_slice %431 {offsets = [0, 0], sizes = [1, 32], strides = [1, 1]} : vector<2x32xf32> to vector<1x32xf32>
    %433 = vector.extract_strided_slice %431 {offsets = [1, 0], sizes = [1, 32], strides = [1, 1]} : vector<2x32xf32> to vector<1x32xf32>
    %434 = vector.extract_strided_slice %351 {offsets = [2, 0, 0], sizes = [1, 1, 64], strides = [1, 1, 1]} : vector<8x1x64xf32> to vector<1x1x64xf32>
    %435 = vector.shape_cast %434 : vector<1x1x64xf32> to vector<1x64xf32>
    %436 = vector.extract_strided_slice %351 {offsets = [5, 0, 0], sizes = [1, 1, 64], strides = [1, 1, 1]} : vector<8x1x64xf32> to vector<1x1x64xf32>
    %437 = vector.shape_cast %436 : vector<1x1x64xf32> to vector<1x64xf32>
    %438 = tpu.concatenate %435, %437 in 0 : vector<1x64xf32>, vector<1x64xf32> -> vector<2x64xf32>
    %439 = tpu.concatenate %438, %431 in 1 : vector<2x64xf32>, vector<2x32xf32> -> vector<2x96xf32>
    %cst_64 = arith.constant dense<0.000000e+00> : vector<2x256xf32>
    %440 = tpu.matmul %439, %352, %cst_64 {dimension_numbers = #tpu.dot_dimension_numbers<[1], [0], [0], [1], [0, 0, 1, 1], [], []>} : vector<2x96xf32>, vector<96x256xf32>, vector<2x256xf32> -> vector<2x256xf32>
    %441 = vector.broadcast %353 : vector<1x256xf32> to vector<2x256xf32>
    %442 = arith.addf %440, %441 : vector<2x256xf32>
    %443 = vector.extract_strided_slice %442 {offsets = [0, 0], sizes = [1, 128], strides = [1, 1]} : vector<2x256xf32> to vector<1x128xf32>
    %444 = vector.extract_strided_slice %442 {offsets = [1, 128], sizes = [1, 128], strides = [1, 1]} : vector<2x256xf32> to vector<1x128xf32>
    %445 = tpu.concatenate %443, %444 in 0 : vector<1x128xf32>, vector<1x128xf32> -> vector<2x128xf32>
    %446 = vector.extract_strided_slice %445 {offsets = [0, 0], sizes = [2, 32], strides = [1, 1]} : vector<2x128xf32> to vector<2x32xf32>
    %447 = arith.negf %446 : vector<2x32xf32>
    %448 = math.exp %447 : vector<2x32xf32>
    %cst_65 = arith.constant 1.000000e+00 : f32
    %449 = vector.broadcast %cst_65 : f32 to vector<2x32xf32>
    %450 = arith.addf %449, %448 : vector<2x32xf32>
    %451 = arith.divf %449, %450 : vector<2x32xf32>
    %452 = vector.extract_strided_slice %445 {offsets = [0, 32], sizes = [2, 32], strides = [1, 1]} : vector<2x128xf32> to vector<2x32xf32>
    %453 = arith.negf %452 : vector<2x32xf32>
    %454 = math.exp %453 : vector<2x32xf32>
    %cst_66 = arith.constant 1.000000e+00 : f32
    %455 = vector.broadcast %cst_66 : f32 to vector<2x32xf32>
    %456 = arith.addf %455, %454 : vector<2x32xf32>
    %457 = arith.divf %455, %456 : vector<2x32xf32>
    %458 = vector.extract_strided_slice %445 {offsets = [0, 64], sizes = [2, 32], strides = [1, 1]} : vector<2x128xf32> to vector<2x32xf32>
    %459 = math.tanh %458 : vector<2x32xf32>
    %460 = vector.extract_strided_slice %445 {offsets = [0, 96], sizes = [2, 32], strides = [1, 1]} : vector<2x128xf32> to vector<2x32xf32>
    %461 = arith.negf %460 : vector<2x32xf32>
    %462 = math.exp %461 : vector<2x32xf32>
    %cst_67 = arith.constant 1.000000e+00 : f32
    %463 = vector.broadcast %cst_67 : f32 to vector<2x32xf32>
    %464 = arith.addf %463, %462 : vector<2x32xf32>
    %465 = arith.divf %463, %464 : vector<2x32xf32>
    %466 = arith.mulf %457, %429 : vector<2x32xf32>
    %467 = arith.mulf %451, %459 : vector<2x32xf32>
    %468 = arith.addf %466, %467 : vector<2x32xf32>
    %469 = math.tanh %468 : vector<2x32xf32>
    %470 = arith.mulf %465, %469 : vector<2x32xf32>
    %471 = vector.extract_strided_slice %470 {offsets = [0, 0], sizes = [1, 32], strides = [1, 1]} : vector<2x32xf32> to vector<1x32xf32>
    %472 = vector.extract_strided_slice %470 {offsets = [1, 0], sizes = [1, 32], strides = [1, 1]} : vector<2x32xf32> to vector<1x32xf32>
    %473 = vector.extract_strided_slice %351 {offsets = [3, 0, 0], sizes = [1, 1, 64], strides = [1, 1, 1]} : vector<8x1x64xf32> to vector<1x1x64xf32>
    %474 = vector.shape_cast %473 : vector<1x1x64xf32> to vector<1x64xf32>
    %475 = vector.extract_strided_slice %351 {offsets = [4, 0, 0], sizes = [1, 1, 64], strides = [1, 1, 1]} : vector<8x1x64xf32> to vector<1x1x64xf32>
    %476 = vector.shape_cast %475 : vector<1x1x64xf32> to vector<1x64xf32>
    %477 = tpu.concatenate %474, %476 in 0 : vector<1x64xf32>, vector<1x64xf32> -> vector<2x64xf32>
    %478 = tpu.concatenate %477, %470 in 1 : vector<2x64xf32>, vector<2x32xf32> -> vector<2x96xf32>
    %cst_68 = arith.constant dense<0.000000e+00> : vector<2x256xf32>
    %479 = tpu.matmul %478, %352, %cst_68 {dimension_numbers = #tpu.dot_dimension_numbers<[1], [0], [0], [1], [0, 0, 1, 1], [], []>} : vector<2x96xf32>, vector<96x256xf32>, vector<2x256xf32> -> vector<2x256xf32>
    %480 = vector.broadcast %353 : vector<1x256xf32> to vector<2x256xf32>
    %481 = arith.addf %479, %480 : vector<2x256xf32>
    %482 = vector.extract_strided_slice %481 {offsets = [0, 0], sizes = [1, 128], strides = [1, 1]} : vector<2x256xf32> to vector<1x128xf32>
    %483 = vector.extract_strided_slice %481 {offsets = [1, 128], sizes = [1, 128], strides = [1, 1]} : vector<2x256xf32> to vector<1x128xf32>
    %484 = tpu.concatenate %482, %483 in 0 : vector<1x128xf32>, vector<1x128xf32> -> vector<2x128xf32>
    %485 = vector.extract_strided_slice %484 {offsets = [0, 0], sizes = [2, 32], strides = [1, 1]} : vector<2x128xf32> to vector<2x32xf32>
    %486 = arith.negf %485 : vector<2x32xf32>
    %487 = math.exp %486 : vector<2x32xf32>
    %cst_69 = arith.constant 1.000000e+00 : f32
    %488 = vector.broadcast %cst_69 : f32 to vector<2x32xf32>
    %489 = arith.addf %488, %487 : vector<2x32xf32>
    %490 = arith.divf %488, %489 : vector<2x32xf32>
    %491 = vector.extract_strided_slice %484 {offsets = [0, 32], sizes = [2, 32], strides = [1, 1]} : vector<2x128xf32> to vector<2x32xf32>
    %492 = arith.negf %491 : vector<2x32xf32>
    %493 = math.exp %492 : vector<2x32xf32>
    %cst_70 = arith.constant 1.000000e+00 : f32
    %494 = vector.broadcast %cst_70 : f32 to vector<2x32xf32>
    %495 = arith.addf %494, %493 : vector<2x32xf32>
    %496 = arith.divf %494, %495 : vector<2x32xf32>
    %497 = vector.extract_strided_slice %484 {offsets = [0, 64], sizes = [2, 32], strides = [1, 1]} : vector<2x128xf32> to vector<2x32xf32>
    %498 = math.tanh %497 : vector<2x32xf32>
    %499 = vector.extract_strided_slice %484 {offsets = [0, 96], sizes = [2, 32], strides = [1, 1]} : vector<2x128xf32> to vector<2x32xf32>
    %500 = arith.negf %499 : vector<2x32xf32>
    %501 = math.exp %500 : vector<2x32xf32>
    %cst_71 = arith.constant 1.000000e+00 : f32
    %502 = vector.broadcast %cst_71 : f32 to vector<2x32xf32>
    %503 = arith.addf %502, %501 : vector<2x32xf32>
    %504 = arith.divf %502, %503 : vector<2x32xf32>
    %505 = arith.mulf %496, %468 : vector<2x32xf32>
    %506 = arith.mulf %490, %498 : vector<2x32xf32>
    %507 = arith.addf %505, %506 : vector<2x32xf32>
    %508 = math.tanh %507 : vector<2x32xf32>
    %509 = arith.mulf %504, %508 : vector<2x32xf32>
    %510 = vector.extract_strided_slice %509 {offsets = [0, 0], sizes = [1, 32], strides = [1, 1]} : vector<2x32xf32> to vector<1x32xf32>
    %511 = vector.extract_strided_slice %509 {offsets = [1, 0], sizes = [1, 32], strides = [1, 1]} : vector<2x32xf32> to vector<1x32xf32>
    %512 = vector.extract_strided_slice %351 {offsets = [4, 0, 0], sizes = [1, 1, 64], strides = [1, 1, 1]} : vector<8x1x64xf32> to vector<1x1x64xf32>
    %513 = vector.shape_cast %512 : vector<1x1x64xf32> to vector<1x64xf32>
    %514 = vector.extract_strided_slice %351 {offsets = [3, 0, 0], sizes = [1, 1, 64], strides = [1, 1, 1]} : vector<8x1x64xf32> to vector<1x1x64xf32>
    %515 = vector.shape_cast %514 : vector<1x1x64xf32> to vector<1x64xf32>
    %516 = tpu.concatenate %513, %515 in 0 : vector<1x64xf32>, vector<1x64xf32> -> vector<2x64xf32>
    %517 = tpu.concatenate %516, %509 in 1 : vector<2x64xf32>, vector<2x32xf32> -> vector<2x96xf32>
    %cst_72 = arith.constant dense<0.000000e+00> : vector<2x256xf32>
    %518 = tpu.matmul %517, %352, %cst_72 {dimension_numbers = #tpu.dot_dimension_numbers<[1], [0], [0], [1], [0, 0, 1, 1], [], []>} : vector<2x96xf32>, vector<96x256xf32>, vector<2x256xf32> -> vector<2x256xf32>
    %519 = vector.broadcast %353 : vector<1x256xf32> to vector<2x256xf32>
    %520 = arith.addf %518, %519 : vector<2x256xf32>
    %521 = vector.extract_strided_slice %520 {offsets = [0, 0], sizes = [1, 128], strides = [1, 1]} : vector<2x256xf32> to vector<1x128xf32>
    %522 = vector.extract_strided_slice %520 {offsets = [1, 128], sizes = [1, 128], strides = [1, 1]} : vector<2x256xf32> to vector<1x128xf32>
    %523 = tpu.concatenate %521, %522 in 0 : vector<1x128xf32>, vector<1x128xf32> -> vector<2x128xf32>
    %524 = vector.extract_strided_slice %523 {offsets = [0, 0], sizes = [2, 32], strides = [1, 1]} : vector<2x128xf32> to vector<2x32xf32>
    %525 = arith.negf %524 : vector<2x32xf32>
    %526 = math.exp %525 : vector<2x32xf32>
    %cst_73 = arith.constant 1.000000e+00 : f32
    %527 = vector.broadcast %cst_73 : f32 to vector<2x32xf32>
    %528 = arith.addf %527, %526 : vector<2x32xf32>
    %529 = arith.divf %527, %528 : vector<2x32xf32>
    %530 = vector.extract_strided_slice %523 {offsets = [0, 32], sizes = [2, 32], strides = [1, 1]} : vector<2x128xf32> to vector<2x32xf32>
    %531 = arith.negf %530 : vector<2x32xf32>
    %532 = math.exp %531 : vector<2x32xf32>
    %cst_74 = arith.constant 1.000000e+00 : f32
    %533 = vector.broadcast %cst_74 : f32 to vector<2x32xf32>
    %534 = arith.addf %533, %532 : vector<2x32xf32>
    %535 = arith.divf %533, %534 : vector<2x32xf32>
    %536 = vector.extract_strided_slice %523 {offsets = [0, 64], sizes = [2, 32], strides = [1, 1]} : vector<2x128xf32> to vector<2x32xf32>
    %537 = math.tanh %536 : vector<2x32xf32>
    %538 = vector.extract_strided_slice %523 {offsets = [0, 96], sizes = [2, 32], strides = [1, 1]} : vector<2x128xf32> to vector<2x32xf32>
    %539 = arith.negf %538 : vector<2x32xf32>
    %540 = math.exp %539 : vector<2x32xf32>
    %cst_75 = arith.constant 1.000000e+00 : f32
    %541 = vector.broadcast %cst_75 : f32 to vector<2x32xf32>
    %542 = arith.addf %541, %540 : vector<2x32xf32>
    %543 = arith.divf %541, %542 : vector<2x32xf32>
    %544 = arith.mulf %535, %507 : vector<2x32xf32>
    %545 = arith.mulf %529, %537 : vector<2x32xf32>
    %546 = arith.addf %544, %545 : vector<2x32xf32>
    %547 = math.tanh %546 : vector<2x32xf32>
    %548 = arith.mulf %543, %547 : vector<2x32xf32>
    %549 = vector.extract_strided_slice %548 {offsets = [0, 0], sizes = [1, 32], strides = [1, 1]} : vector<2x32xf32> to vector<1x32xf32>
    %550 = vector.extract_strided_slice %548 {offsets = [1, 0], sizes = [1, 32], strides = [1, 1]} : vector<2x32xf32> to vector<1x32xf32>
    %551 = vector.extract_strided_slice %351 {offsets = [5, 0, 0], sizes = [1, 1, 64], strides = [1, 1, 1]} : vector<8x1x64xf32> to vector<1x1x64xf32>
    %552 = vector.shape_cast %551 : vector<1x1x64xf32> to vector<1x64xf32>
    %553 = vector.extract_strided_slice %351 {offsets = [2, 0, 0], sizes = [1, 1, 64], strides = [1, 1, 1]} : vector<8x1x64xf32> to vector<1x1x64xf32>
    %554 = vector.shape_cast %553 : vector<1x1x64xf32> to vector<1x64xf32>
    %555 = tpu.concatenate %552, %554 in 0 : vector<1x64xf32>, vector<1x64xf32> -> vector<2x64xf32>
    %556 = tpu.concatenate %555, %548 in 1 : vector<2x64xf32>, vector<2x32xf32> -> vector<2x96xf32>
    %cst_76 = arith.constant dense<0.000000e+00> : vector<2x256xf32>
    %557 = tpu.matmul %556, %352, %cst_76 {dimension_numbers = #tpu.dot_dimension_numbers<[1], [0], [0], [1], [0, 0, 1, 1], [], []>} : vector<2x96xf32>, vector<96x256xf32>, vector<2x256xf32> -> vector<2x256xf32>
    %558 = vector.broadcast %353 : vector<1x256xf32> to vector<2x256xf32>
    %559 = arith.addf %557, %558 : vector<2x256xf32>
    %560 = vector.extract_strided_slice %559 {offsets = [0, 0], sizes = [1, 128], strides = [1, 1]} : vector<2x256xf32> to vector<1x128xf32>
    %561 = vector.extract_strided_slice %559 {offsets = [1, 128], sizes = [1, 128], strides = [1, 1]} : vector<2x256xf32> to vector<1x128xf32>
    %562 = tpu.concatenate %560, %561 in 0 : vector<1x128xf32>, vector<1x128xf32> -> vector<2x128xf32>
    %563 = vector.extract_strided_slice %562 {offsets = [0, 0], sizes = [2, 32], strides = [1, 1]} : vector<2x128xf32> to vector<2x32xf32>
    %564 = arith.negf %563 : vector<2x32xf32>
    %565 = math.exp %564 : vector<2x32xf32>
    %cst_77 = arith.constant 1.000000e+00 : f32
    %566 = vector.broadcast %cst_77 : f32 to vector<2x32xf32>
    %567 = arith.addf %566, %565 : vector<2x32xf32>
    %568 = arith.divf %566, %567 : vector<2x32xf32>
    %569 = vector.extract_strided_slice %562 {offsets = [0, 32], sizes = [2, 32], strides = [1, 1]} : vector<2x128xf32> to vector<2x32xf32>
    %570 = arith.negf %569 : vector<2x32xf32>
    %571 = math.exp %570 : vector<2x32xf32>
    %cst_78 = arith.constant 1.000000e+00 : f32
    %572 = vector.broadcast %cst_78 : f32 to vector<2x32xf32>
    %573 = arith.addf %572, %571 : vector<2x32xf32>
    %574 = arith.divf %572, %573 : vector<2x32xf32>
    %575 = vector.extract_strided_slice %562 {offsets = [0, 64], sizes = [2, 32], strides = [1, 1]} : vector<2x128xf32> to vector<2x32xf32>
    %576 = math.tanh %575 : vector<2x32xf32>
    %577 = vector.extract_strided_slice %562 {offsets = [0, 96], sizes = [2, 32], strides = [1, 1]} : vector<2x128xf32> to vector<2x32xf32>
    %578 = arith.negf %577 : vector<2x32xf32>
    %579 = math.exp %578 : vector<2x32xf32>
    %cst_79 = arith.constant 1.000000e+00 : f32
    %580 = vector.broadcast %cst_79 : f32 to vector<2x32xf32>
    %581 = arith.addf %580, %579 : vector<2x32xf32>
    %582 = arith.divf %580, %581 : vector<2x32xf32>
    %583 = arith.mulf %574, %546 : vector<2x32xf32>
    %584 = arith.mulf %568, %576 : vector<2x32xf32>
    %585 = arith.addf %583, %584 : vector<2x32xf32>
    %586 = math.tanh %585 : vector<2x32xf32>
    %587 = arith.mulf %582, %586 : vector<2x32xf32>
    %588 = vector.extract_strided_slice %587 {offsets = [0, 0], sizes = [1, 32], strides = [1, 1]} : vector<2x32xf32> to vector<1x32xf32>
    %589 = vector.extract_strided_slice %587 {offsets = [1, 0], sizes = [1, 32], strides = [1, 1]} : vector<2x32xf32> to vector<1x32xf32>
    %590 = vector.extract_strided_slice %351 {offsets = [6, 0, 0], sizes = [1, 1, 64], strides = [1, 1, 1]} : vector<8x1x64xf32> to vector<1x1x64xf32>
    %591 = vector.shape_cast %590 : vector<1x1x64xf32> to vector<1x64xf32>
    %592 = vector.extract_strided_slice %351 {offsets = [1, 0, 0], sizes = [1, 1, 64], strides = [1, 1, 1]} : vector<8x1x64xf32> to vector<1x1x64xf32>
    %593 = vector.shape_cast %592 : vector<1x1x64xf32> to vector<1x64xf32>
    %594 = tpu.concatenate %591, %593 in 0 : vector<1x64xf32>, vector<1x64xf32> -> vector<2x64xf32>
    %595 = tpu.concatenate %594, %587 in 1 : vector<2x64xf32>, vector<2x32xf32> -> vector<2x96xf32>
    %cst_80 = arith.constant dense<0.000000e+00> : vector<2x256xf32>
    %596 = tpu.matmul %595, %352, %cst_80 {dimension_numbers = #tpu.dot_dimension_numbers<[1], [0], [0], [1], [0, 0, 1, 1], [], []>} : vector<2x96xf32>, vector<96x256xf32>, vector<2x256xf32> -> vector<2x256xf32>
    %597 = vector.broadcast %353 : vector<1x256xf32> to vector<2x256xf32>
    %598 = arith.addf %596, %597 : vector<2x256xf32>
    %599 = vector.extract_strided_slice %598 {offsets = [0, 0], sizes = [1, 128], strides = [1, 1]} : vector<2x256xf32> to vector<1x128xf32>
    %600 = vector.extract_strided_slice %598 {offsets = [1, 128], sizes = [1, 128], strides = [1, 1]} : vector<2x256xf32> to vector<1x128xf32>
    %601 = tpu.concatenate %599, %600 in 0 : vector<1x128xf32>, vector<1x128xf32> -> vector<2x128xf32>
    %602 = vector.extract_strided_slice %601 {offsets = [0, 0], sizes = [2, 32], strides = [1, 1]} : vector<2x128xf32> to vector<2x32xf32>
    %603 = arith.negf %602 : vector<2x32xf32>
    %604 = math.exp %603 : vector<2x32xf32>
    %cst_81 = arith.constant 1.000000e+00 : f32
    %605 = vector.broadcast %cst_81 : f32 to vector<2x32xf32>
    %606 = arith.addf %605, %604 : vector<2x32xf32>
    %607 = arith.divf %605, %606 : vector<2x32xf32>
    %608 = vector.extract_strided_slice %601 {offsets = [0, 32], sizes = [2, 32], strides = [1, 1]} : vector<2x128xf32> to vector<2x32xf32>
    %609 = arith.negf %608 : vector<2x32xf32>
    %610 = math.exp %609 : vector<2x32xf32>
    %cst_82 = arith.constant 1.000000e+00 : f32
    %611 = vector.broadcast %cst_82 : f32 to vector<2x32xf32>
    %612 = arith.addf %611, %610 : vector<2x32xf32>
    %613 = arith.divf %611, %612 : vector<2x32xf32>
    %614 = vector.extract_strided_slice %601 {offsets = [0, 64], sizes = [2, 32], strides = [1, 1]} : vector<2x128xf32> to vector<2x32xf32>
    %615 = math.tanh %614 : vector<2x32xf32>
    %616 = vector.extract_strided_slice %601 {offsets = [0, 96], sizes = [2, 32], strides = [1, 1]} : vector<2x128xf32> to vector<2x32xf32>
    %617 = arith.negf %616 : vector<2x32xf32>
    %618 = math.exp %617 : vector<2x32xf32>
    %cst_83 = arith.constant 1.000000e+00 : f32
    %619 = vector.broadcast %cst_83 : f32 to vector<2x32xf32>
    %620 = arith.addf %619, %618 : vector<2x32xf32>
    %621 = arith.divf %619, %620 : vector<2x32xf32>
    %622 = arith.mulf %613, %585 : vector<2x32xf32>
    %623 = arith.mulf %607, %615 : vector<2x32xf32>
    %624 = arith.addf %622, %623 : vector<2x32xf32>
    %625 = math.tanh %624 : vector<2x32xf32>
    %626 = arith.mulf %621, %625 : vector<2x32xf32>
    %627 = vector.extract_strided_slice %626 {offsets = [0, 0], sizes = [1, 32], strides = [1, 1]} : vector<2x32xf32> to vector<1x32xf32>
    %628 = vector.extract_strided_slice %626 {offsets = [1, 0], sizes = [1, 32], strides = [1, 1]} : vector<2x32xf32> to vector<1x32xf32>
    %629 = vector.extract_strided_slice %351 {offsets = [7, 0, 0], sizes = [1, 1, 64], strides = [1, 1, 1]} : vector<8x1x64xf32> to vector<1x1x64xf32>
    %630 = vector.shape_cast %629 : vector<1x1x64xf32> to vector<1x64xf32>
    %631 = vector.extract_strided_slice %351 {offsets = [0, 0, 0], sizes = [1, 1, 64], strides = [1, 1, 1]} : vector<8x1x64xf32> to vector<1x1x64xf32>
    %632 = vector.shape_cast %631 : vector<1x1x64xf32> to vector<1x64xf32>
    %633 = tpu.concatenate %630, %632 in 0 : vector<1x64xf32>, vector<1x64xf32> -> vector<2x64xf32>
    %634 = tpu.concatenate %633, %626 in 1 : vector<2x64xf32>, vector<2x32xf32> -> vector<2x96xf32>
    %cst_84 = arith.constant dense<0.000000e+00> : vector<2x256xf32>
    %635 = tpu.matmul %634, %352, %cst_84 {dimension_numbers = #tpu.dot_dimension_numbers<[1], [0], [0], [1], [0, 0, 1, 1], [], []>} : vector<2x96xf32>, vector<96x256xf32>, vector<2x256xf32> -> vector<2x256xf32>
    %636 = vector.broadcast %353 : vector<1x256xf32> to vector<2x256xf32>
    %637 = arith.addf %635, %636 : vector<2x256xf32>
    %638 = vector.extract_strided_slice %637 {offsets = [0, 0], sizes = [1, 128], strides = [1, 1]} : vector<2x256xf32> to vector<1x128xf32>
    %639 = vector.extract_strided_slice %637 {offsets = [1, 128], sizes = [1, 128], strides = [1, 1]} : vector<2x256xf32> to vector<1x128xf32>
    %640 = tpu.concatenate %638, %639 in 0 : vector<1x128xf32>, vector<1x128xf32> -> vector<2x128xf32>
    %641 = vector.extract_strided_slice %640 {offsets = [0, 0], sizes = [2, 32], strides = [1, 1]} : vector<2x128xf32> to vector<2x32xf32>
    %642 = arith.negf %641 : vector<2x32xf32>
    %643 = math.exp %642 : vector<2x32xf32>
    %cst_85 = arith.constant 1.000000e+00 : f32
    %644 = vector.broadcast %cst_85 : f32 to vector<2x32xf32>
    %645 = arith.addf %644, %643 : vector<2x32xf32>
    %646 = arith.divf %644, %645 : vector<2x32xf32>
    %647 = vector.extract_strided_slice %640 {offsets = [0, 32], sizes = [2, 32], strides = [1, 1]} : vector<2x128xf32> to vector<2x32xf32>
    %648 = arith.negf %647 : vector<2x32xf32>
    %649 = math.exp %648 : vector<2x32xf32>
    %cst_86 = arith.constant 1.000000e+00 : f32
    %650 = vector.broadcast %cst_86 : f32 to vector<2x32xf32>
    %651 = arith.addf %650, %649 : vector<2x32xf32>
    %652 = arith.divf %650, %651 : vector<2x32xf32>
    %653 = vector.extract_strided_slice %640 {offsets = [0, 64], sizes = [2, 32], strides = [1, 1]} : vector<2x128xf32> to vector<2x32xf32>
    %654 = math.tanh %653 : vector<2x32xf32>
    %655 = vector.extract_strided_slice %640 {offsets = [0, 96], sizes = [2, 32], strides = [1, 1]} : vector<2x128xf32> to vector<2x32xf32>
    %656 = arith.negf %655 : vector<2x32xf32>
    %657 = math.exp %656 : vector<2x32xf32>
    %cst_87 = arith.constant 1.000000e+00 : f32
    %658 = vector.broadcast %cst_87 : f32 to vector<2x32xf32>
    %659 = arith.addf %658, %657 : vector<2x32xf32>
    %660 = arith.divf %658, %659 : vector<2x32xf32>
    %661 = arith.mulf %652, %624 : vector<2x32xf32>
    %662 = arith.mulf %646, %654 : vector<2x32xf32>
    %663 = arith.addf %661, %662 : vector<2x32xf32>
    %664 = math.tanh %663 : vector<2x32xf32>
    %665 = arith.mulf %660, %664 : vector<2x32xf32>
    %666 = vector.extract_strided_slice %665 {offsets = [0, 0], sizes = [1, 32], strides = [1, 1]} : vector<2x32xf32> to vector<1x32xf32>
    %667 = vector.extract_strided_slice %665 {offsets = [1, 0], sizes = [1, 32], strides = [1, 1]} : vector<2x32xf32> to vector<1x32xf32>
    %668 = vector.extract_strided_slice %665 {offsets = [0, 0], sizes = [1, 32], strides = [1, 1]} : vector<2x32xf32> to vector<1x32xf32>
    %c2 = arith.constant 2 : index
    %c0_88 = arith.constant 0 : index
    %c0_89 = arith.constant 0 : index
    %669 = vector.load %arg6[%c2, %c0_88, %c0_89] : memref<4x1x32xf32, #tpu.memory_space<vmem>>, vector<1x1x32xf32>
    %670 = vector.shape_cast %669 : vector<1x1x32xf32> to vector<1x32xf32>
    %671 = vector.shape_cast %668 : vector<1x32xf32> to vector<1x1x32xf32>
    tpu.vector_store %arg6[%c2, %c0_88, %c0_89], %671 {strides = array<i32>} : memref<4x1x32xf32, #tpu.memory_space<vmem>>, vector<1x1x32xf32>,
    %672 = vector.extract_strided_slice %665 {offsets = [1, 0], sizes = [1, 32], strides = [1, 1]} : vector<2x32xf32> to vector<1x32xf32>
    %c3 = arith.constant 3 : index
    %c0_90 = arith.constant 0 : index
    %c0_91 = arith.constant 0 : index
    %673 = vector.load %arg6[%c3, %c0_90, %c0_91] : memref<4x1x32xf32, #tpu.memory_space<vmem>>, vector<1x1x32xf32>
    %674 = vector.shape_cast %673 : vector<1x1x32xf32> to vector<1x32xf32>
    %675 = vector.shape_cast %672 : vector<1x32xf32> to vector<1x1x32xf32>
    tpu.vector_store %arg6[%c3, %c0_90, %c0_91], %675 {strides = array<i32>} : memref<4x1x32xf32, #tpu.memory_space<vmem>>, vector<1x1x32xf32>,
    %676 = vector.extract_strided_slice %663 {offsets = [0, 0], sizes = [1, 32], strides = [1, 1]} : vector<2x32xf32> to vector<1x32xf32>
    %c2_92 = arith.constant 2 : index
    %c0_93 = arith.constant 0 : index
    %c0_94 = arith.constant 0 : index
    %677 = vector.load %arg7[%c2_92, %c0_93, %c0_94] : memref<4x1x32xf32, #tpu.memory_space<vmem>>, vector<1x1x32xf32>
    %678 = vector.shape_cast %677 : vector<1x1x32xf32> to vector<1x32xf32>
    %679 = vector.shape_cast %676 : vector<1x32xf32> to vector<1x1x32xf32>
    tpu.vector_store %arg7[%c2_92, %c0_93, %c0_94], %679 {strides = array<i32>} : memref<4x1x32xf32, #tpu.memory_space<vmem>>, vector<1x1x32xf32>,
    %680 = vector.extract_strided_slice %663 {offsets = [1, 0], sizes = [1, 32], strides = [1, 1]} : vector<2x32xf32> to vector<1x32xf32>
    %c3_95 = arith.constant 3 : index
    %c0_96 = arith.constant 0 : index
    %c0_97 = arith.constant 0 : index
    %681 = vector.load %arg7[%c3_95, %c0_96, %c0_97] : memref<4x1x32xf32, #tpu.memory_space<vmem>>, vector<1x1x32xf32>
    %682 = vector.shape_cast %681 : vector<1x1x32xf32> to vector<1x32xf32>
    %683 = vector.shape_cast %680 : vector<1x32xf32> to vector<1x1x32xf32>
    tpu.vector_store %arg7[%c3_95, %c0_96, %c0_97], %683 {strides = array<i32>} : memref<4x1x32xf32, #tpu.memory_space<vmem>>, vector<1x1x32xf32>,
    %684 = vector.shape_cast %393 : vector<1x32xf32> to vector<1x1x32xf32>
    %685 = vector.shape_cast %432 : vector<1x32xf32> to vector<1x1x32xf32>
    %686 = vector.shape_cast %471 : vector<1x32xf32> to vector<1x1x32xf32>
    %687 = vector.shape_cast %510 : vector<1x32xf32> to vector<1x1x32xf32>
    %688 = vector.shape_cast %549 : vector<1x32xf32> to vector<1x1x32xf32>
    %689 = vector.shape_cast %588 : vector<1x32xf32> to vector<1x1x32xf32>
    %690 = vector.shape_cast %627 : vector<1x32xf32> to vector<1x1x32xf32>
    %691 = vector.shape_cast %666 : vector<1x32xf32> to vector<1x1x32xf32>
    %692 = tpu.concatenate %684, %685, %686, %687, %688, %689, %690, %691 in 0 : vector<1x1x32xf32>, vector<1x1x32xf32>, vector<1x1x32xf32>, vector<1x1x32xf32>, vector<1x1x32xf32>, vector<1x1x32xf32>, vector<1x1x32xf32>, vector<1x1x32xf32> -> vector<8x1x32xf32>
    %693 = vector.shape_cast %667 : vector<1x32xf32> to vector<1x1x32xf32>
    %694 = vector.shape_cast %628 : vector<1x32xf32> to vector<1x1x32xf32>
    %695 = vector.shape_cast %589 : vector<1x32xf32> to vector<1x1x32xf32>
    %696 = vector.shape_cast %550 : vector<1x32xf32> to vector<1x1x32xf32>
    %697 = vector.shape_cast %511 : vector<1x32xf32> to vector<1x1x32xf32>
    %698 = vector.shape_cast %472 : vector<1x32xf32> to vector<1x1x32xf32>
    %699 = vector.shape_cast %433 : vector<1x32xf32> to vector<1x1x32xf32>
    %700 = vector.shape_cast %394 : vector<1x32xf32> to vector<1x1x32xf32>
    %701 = tpu.concatenate %693, %694, %695, %696, %697, %698, %699, %700 in 0 : vector<1x1x32xf32>, vector<1x1x32xf32>, vector<1x1x32xf32>, vector<1x1x32xf32>, vector<1x1x32xf32>, vector<1x1x32xf32>, vector<1x1x32xf32>, vector<1x1x32xf32> -> vector<8x1x32xf32>
    %702 = tpu.concatenate %692, %701 in 2 : vector<8x1x32xf32>, vector<8x1x32xf32> -> vector<8x1x64xf32>
    %703 = vector.extract_strided_slice %702 {offsets = [0, 0, 0], sizes = [8, 1, 32], strides = [1, 1, 1]} : vector<8x1x64xf32> to vector<8x1x32xf32>
    %704 = vector.extract_strided_slice %702 {offsets = [0, 0, 32], sizes = [8, 1, 32], strides = [1, 1, 1]} : vector<8x1x64xf32> to vector<8x1x32xf32>
    %705 = arith.addf %703, %704 : vector<8x1x32xf32>
    %706 = arith.addf %705, %0 : vector<8x1x32xf32>
    %c0_98 = arith.constant 0 : index
    %c0_99 = arith.constant 0 : index
    %c0_100 = arith.constant 0 : index
    %707 = vector.load %arg5[%c0_98, %c0_99, %c0_100] : memref<8x1x32xf32, #tpu.memory_space<vmem>>, vector<8x1x32xf32>
    tpu.vector_store %arg5[%c0_98, %c0_99, %c0_100], %706 {strides = array<i32>} : memref<8x1x32xf32, #tpu.memory_space<vmem>>, vector<8x1x32xf32>,
    return
  }
}

</mosaic_0001>

<llo_original>
// kernel: bidirectional_lstm_forward.1
$region0: #{bidirectional_lstm_forward.1}
  #allocation0 [shape = 'u32[]', space=smem, size = 0x4, offset = 0x4, fixed_abs, tag = 'smem constant byte address 0x4 - core index']
  #allocation1 [shape = 'u32[72,128]{1,0:T(1,128)}', space=vmem, size = 0x9000, scoped, tag = 'internal scratch']
  %s0 = inlined_call_operand.vmem [shape: f32[8,1,32], index: 0, kind: input, shape index: {}]
  %s1 = inlined_call_operand.vmem [shape: f32[64,256], index: 1, kind: input, shape index: {}]
  %s2 = inlined_call_operand.vmem [shape: f32[96,256], index: 2, kind: input, shape index: {}]
  %s3 = inlined_call_operand.vmem [shape: f32[1,256], index: 3, kind: input, shape index: {}]
  %s4 = inlined_call_operand.vmem [shape: f32[1,256], index: 4, kind: input, shape index: {}]
  %s5 = inlined_call_operand.hbm [shape: f32[8,1,32], index: 5, kind: output, shape index: {0}]
  %s6 = inlined_call_operand.hbm [shape: f32[4,1,32], index: 6, kind: output, shape index: {1}]
  %s7 = inlined_call_operand.hbm [shape: f32[4,1,32], index: 7, kind: output, shape index: {2}]
  %8 = xla_tuple %s5, %s6, %s7
  %s9 = sld [smem:[#allocation0]]
  $region46: #{bidirectional_lstm_forward.1} parent=0
    _
  %s11 = ssub.s32 1, %s9
  %s12 = scalar_select 0, %s11, %s9
  $region1: #{bidirectional_lstm_forward.1} parent=0
    #allocation2 [shape = 'u8[4096]{0}', space=vmem, size = 0x1000, scoped, tag = 'output window, operand 0, single buffered']
    #allocation3 [shape = 's32[1]{0}', space=sflag, size = 0x4, scoped, tag = 'scoped memory for bidirectional_lstm_forward.1']
    #allocation4 [shape = 'u8[2048]{0}', space=vmem, size = 0x800, scoped, tag = 'output window, operand 1, single buffered']
    #allocation5 [shape = 's32[1]{0}', space=sflag, size = 0x4, scoped, tag = 'scoped memory for bidirectional_lstm_forward.1']
    #allocation6 [shape = 'u8[2048]{0}', space=vmem, size = 0x800, scoped, tag = 'output window, operand 2, single buffered']
    %13 = vsyncpa [#allocation3], 0
    %14 = vsyncpa [#allocation5], 0
    // Predicated region
    $region2: #{bidirectional_lstm_forward.1} parent=1 // pred_check
      _
    $region3: #{bidirectional_lstm_forward.1} parent=1 // pred_check_branch
      %16 = sbr.rel (0) target = $region5
    $region4: #{bidirectional_lstm_forward.1} parent=1 // pred_region
      _
    $region5: #{bidirectional_lstm_forward.1} parent=1 // pred_fallthru
      _
    // Predicated region
    $region6: #{bidirectional_lstm_forward.1} parent=1 // pred_check
      _
    $region7: #{bidirectional_lstm_forward.1} parent=1 // pred_check_branch
      %18 = sbr.rel (0) target = $region9
    $region8: #{bidirectional_lstm_forward.1} parent=1 // pred_region
      _
    $region9: #{bidirectional_lstm_forward.1} parent=1 // pred_fallthru
      _
    // Predicated region
    $region10: #{bidirectional_lstm_forward.1} parent=1 // pred_check
      _
    $region11: #{bidirectional_lstm_forward.1} parent=1 // pred_check_branch
      %20 = sbr.rel (0) target = $region13
    $region12: #{bidirectional_lstm_forward.1} parent=1 // pred_region
      _
    $region13: #{bidirectional_lstm_forward.1} parent=1 // pred_fallthru
      _
    // Predicated region
    $region14: #{bidirectional_lstm_forward.1} parent=1 // pred_check
      _
    $region15: #{bidirectional_lstm_forward.1} parent=1 // pred_check_branch
      %22 = sbr.rel (0) target = $region17
    $region16: #{bidirectional_lstm_forward.1} parent=1 // pred_region
      _
    $region17: #{bidirectional_lstm_forward.1} parent=1 // pred_fallthru
      _
    // Predicated region
    $region18: #{bidirectional_lstm_forward.1} parent=1 // pred_check
      _
    $region19: #{bidirectional_lstm_forward.1} parent=1 // pred_check_branch
      %24 = sbr.rel (0) target = $region21
    $region20: #{bidirectional_lstm_forward.1} parent=1 // pred_region
      _
    $region21: #{bidirectional_lstm_forward.1} parent=1 // pred_fallthru
      _
    %v25 = vld [vmem:[%s0] sm:$0x1]
    %v26 = vld [vmem:[%s0 + $0x1] sm:$0x1]
    %v27 = vld [vmem:[%s0 + $0x2] sm:$0x1]
    %v28 = vld [vmem:[%s0 + $0x3] sm:$0x1]
    %v29 = vld [vmem:[%s0 + $0x4] sm:$0x1]
    %v30 = vld [vmem:[%s0 + $0x5] sm:$0x1]
    %v31 = vld [vmem:[%s0 + $0x6] sm:$0x1]
    %v32 = vld [vmem:[%s0 + $0x7] sm:$0x1]
    %v33 = vld [vmem:[%s1] sm:$0xff]
    %v34 = vld [vmem:[%s1 + $0x8] sm:$0xff]
    %v35 = vld [vmem:[%s1 + $0x10] sm:$0xff]
    %v36 = vld [vmem:[%s1 + $0x18] sm:$0xff]
    %v37 = vld [vmem:[%s1 + $0x20] sm:$0xff]
    %v38 = vld [vmem:[%s1 + $0x28] sm:$0xff]
    %v39 = vld [vmem:[%s1 + $0x30] sm:$0xff]
    %v40 = vld [vmem:[%s1 + $0x38] sm:$0xff]
    %v41 = vld [vmem:[%s1 + $0x40] sm:$0xff]
    %v42 = vld [vmem:[%s1 + $0x48] sm:$0xff]
    %v43 = vld [vmem:[%s1 + $0x50] sm:$0xff]
    %v44 = vld [vmem:[%s1 + $0x58] sm:$0xff]
    %v45 = vld [vmem:[%s1 + $0x60] sm:$0xff]
    %v46 = vld [vmem:[%s1 + $0x68] sm:$0xff]
    %v47 = vld [vmem:[%s1 + $0x70] sm:$0xff]
    %v48 = vld [vmem:[%s1 + $0x78] sm:$0xff]
    %v49 = vld [vmem:[%s3] sm:$0x3]
    %v51 = vperm.slane %v32, 0
    %vm53 = vcmask 1040384
    %v54 = vsel %vm53, %v25, %v51
    %vm55 = vcmask 261120
    %v56 = vsel %vm55, %v54, 0.0
    %v58 = vperm.slane %v49, 0
    %v59 = vperm.slane %v49, 1
    %vm62 = vcmask 523264
    %v64 = vsel %vm62, %v56, 0
    %66 = vmatpush.msra.mxu0 0.0
    %67 = vmatpush.msra.mxu0 0.0
    %68 = vmatpush.msra.mxu0 0.0
    %69 = vmatpush.msra.mxu0 0.0
    %70 = vmatpush.msra.mxu0 0.0
    %71 = vmatpush.msra.mxu0 0.0
    %72 = vmatpush.msra.mxu0 0.0
    %73 = vmatpush.msra.mxu0 0.0
    %74 = vmatpush.msra.mxu0 %v47
    %75 = vmatpush.msra.mxu0 %v45
    %76 = vmatpush.msra.mxu0 %v43
    %77 = vmatpush.msra.mxu0 %v41
    %78 = vmatpush.msra.mxu0 %v39
    %79 = vmatpush.msra.mxu0 %v37
    %80 = vmatpush.msra.mxu0 %v35
    %81 = vmatpush.msra.mxu0 %v33
    %82 = vmatmul.f32.gmra.mxu0 %v64
    %v83 = vpop.f32.mrf.mxu0
    %v84 = vadd.f32 %v58, %v83
    %85 = vdwg.mxu0
    %86 = vmatpush.msra.mxu0 0.0
    %87 = vmatpush.msra.mxu0 0.0
    %88 = vmatpush.msra.mxu0 0.0
    %89 = vmatpush.msra.mxu0 0.0
    %90 = vmatpush.msra.mxu0 0.0
    %91 = vmatpush.msra.mxu0 0.0
    %92 = vmatpush.msra.mxu0 0.0
    %93 = vmatpush.msra.mxu0 0.0
    %94 = vmatpush.msra.mxu0 %v48
    %95 = vmatpush.msra.mxu0 %v46
    %96 = vmatpush.msra.mxu0 %v44
    %97 = vmatpush.msra.mxu0 %v42
    %98 = vmatpush.msra.mxu0 %v40
    %99 = vmatpush.msra.mxu0 %v38
    %100 = vmatpush.msra.mxu0 %v36
    %101 = vmatpush.msra.mxu0 %v34
    %102 = vmatmul.f32.gmra.mxu0 %v64
    %v103 = vpop.f32.mrf.mxu0
    %v104 = vadd.f32 %v59, %v103
    %105 = vdwg.mxu0
    %v106 = vsel %vm53, %v84, %v104
    %v107 = vxor.u32 %v106, 2147483648
    %v108 = vmul.f32 %v107, 1.442695
    %v109 = vpow.pop %v108
    %v110 = vadd.f32 %v109, 1.0
    %v111 = vrcp.pop %v110
    %v112 = vmul.f32 %v110, %v111
    %v113 = vsub.f32 1.0, %v112
    %v114 = vmul.f32 %v111, %v113
    %v115 = vadd.f32 %v111, %v114
    %vm116 = vweird.f32 %v110
    %vm117 = vweird.f32 %v111
    %vm118 = vmor %vm116, %vm117
    %v119 = vsel %vm118, %v111, %v115
    %v120 = vand.u32 2147483647, %v110
    %vm121 = vcmp.eq.f32.partialorder %v120, 8.507059e+37
    %v122 = vand.u32 %v110, 2147483648
    %v123 = vor.u32 1.1754944e-38, %v122
    %v124 = vsel %vm121, %v123, %v119
    %v125 = vmul.f32 1.0, %v124
    %v126 = vtanh.pop %v106
    %v127 = vmul.f32 %v125, 0.0
    %129 = vrot.lane.b32.xlu0 %v126, 64
    %v130 = vpop.permute.xlu0 %129
    %v132 = vmul.f32 %v125, %v130
    %134 = vrot.lane.b32.xlu0 %v132, 32
    %v135 = vpop.permute.xlu0 %134
    %v137 = vadd.f32 %v127, %v135
    %v138 = vtanh.pop %v137
    %140 = vrot.lane.b32.xlu0 %v138, 64
    %v141 = vpop.permute.xlu0 %140
    %v143 = vmul.f32 %v125, %v141
    %v145 = vperm.slane %v31, 0
    %v147 = vsel %vm53, %v26, %v145
    %149 = vrot.lane.b32.xlu0 %v143, 64
    %v150 = vpop.permute.xlu0 %149
    %v152 = vsel %vm55, %v147, %v150
    %v154 = vsel %vm62, %v152, 0
    %156 = vmatpush.msra.mxu0 0.0
    %157 = vmatpush.msra.mxu0 0.0
    %158 = vmatpush.msra.mxu0 0.0
    %159 = vmatpush.msra.mxu0 0.0
    %160 = vmatpush.msra.mxu0 0.0
    %161 = vmatpush.msra.mxu0 0.0
    %162 = vmatpush.msra.mxu0 0.0
    %163 = vmatpush.msra.mxu0 0.0
    %164 = vmatpush.msra.mxu0 %v47
    %165 = vmatpush.msra.mxu0 %v45
    %166 = vmatpush.msra.mxu0 %v43
    %167 = vmatpush.msra.mxu0 %v41
    %168 = vmatpush.msra.mxu0 %v39
    %169 = vmatpush.msra.mxu0 %v37
    %170 = vmatpush.msra.mxu0 %v35
    %171 = vmatpush.msra.mxu0 %v33
    %172 = vmatmul.f32.gmra.mxu0 %v154
    %v173 = vpop.f32.mrf.mxu0
    %v174 = vadd.f32 %v58, %v173
    %175 = vdwg.mxu0
    %176 = vmatpush.msra.mxu0 0.0
    %177 = vmatpush.msra.mxu0 0.0
    %178 = vmatpush.msra.mxu0 0.0
    %179 = vmatpush.msra.mxu0 0.0
    %180 = vmatpush.msra.mxu0 0.0
    %181 = vmatpush.msra.mxu0 0.0
    %182 = vmatpush.msra.mxu0 0.0
    %183 = vmatpush.msra.mxu0 0.0
    %184 = vmatpush.msra.mxu0 %v48
    %185 = vmatpush.msra.mxu0 %v46
    %186 = vmatpush.msra.mxu0 %v44
    %187 = vmatpush.msra.mxu0 %v42
    %188 = vmatpush.msra.mxu0 %v40
    %189 = vmatpush.msra.mxu0 %v38
    %190 = vmatpush.msra.mxu0 %v36
    %191 = vmatpush.msra.mxu0 %v34
    %192 = vmatmul.f32.gmra.mxu0 %v154
    %v193 = vpop.f32.mrf.mxu0
    %v194 = vadd.f32 %v59, %v193
    %195 = vdwg.mxu0
    %v196 = vsel %vm53, %v174, %v194
    %v197 = vxor.u32 %v196, 2147483648
    %v198 = vmul.f32 %v197, 1.442695
    %v199 = vpow.pop %v198
    %v200 = vadd.f32 %v199, 1.0
    %v201 = vrcp.pop %v200
    %v202 = vmul.f32 %v200, %v201
    %v203 = vsub.f32 1.0, %v202
    %v204 = vmul.f32 %v201, %v203
    %v205 = vadd.f32 %v201, %v204
    %vm206 = vweird.f32 %v200
    %vm207 = vweird.f32 %v201
    %vm208 = vmor %vm206, %vm207
    %v209 = vsel %vm208, %v201, %v205
    %v210 = vand.u32 2147483647, %v200
    %vm211 = vcmp.eq.f32.partialorder %v210, 8.507059e+37
    %v212 = vand.u32 %v200, 2147483648
    %v213 = vor.u32 1.1754944e-38, %v212
    %v214 = vsel %vm211, %v213, %v209
    %v215 = vmul.f32 1.0, %v214
    %v216 = vtanh.pop %v196
    %v217 = vmul.f32 %v215, %v137
    %219 = vrot.lane.b32.xlu0 %v216, 64
    %v220 = vpop.permute.xlu0 %219
    %v222 = vmul.f32 %v215, %v220
    %224 = vrot.lane.b32.xlu0 %v222, 32
    %v225 = vpop.permute.xlu0 %224
    %v227 = vadd.f32 %v217, %v225
    %v228 = vtanh.pop %v227
    %230 = vrot.lane.b32.xlu0 %v228, 64
    %v231 = vpop.permute.xlu0 %230
    %v233 = vmul.f32 %v215, %v231
    %v235 = vperm.slane %v30, 0
    %v237 = vsel %vm53, %v27, %v235
    %239 = vrot.lane.b32.xlu0 %v233, 64
    %v240 = vpop.permute.xlu0 %239
    %v242 = vsel %vm55, %v237, %v240
    %v244 = vsel %vm62, %v242, 0
    %246 = vmatpush.msra.mxu0 0.0
    %247 = vmatpush.msra.mxu0 0.0
    %248 = vmatpush.msra.mxu0 0.0
    %249 = vmatpush.msra.mxu0 0.0
    %250 = vmatpush.msra.mxu0 0.0
    %251 = vmatpush.msra.mxu0 0.0
    %252 = vmatpush.msra.mxu0 0.0
    %253 = vmatpush.msra.mxu0 0.0
    %254 = vmatpush.msra.mxu0 %v47
    %255 = vmatpush.msra.mxu0 %v45
    %256 = vmatpush.msra.mxu0 %v43
    %257 = vmatpush.msra.mxu0 %v41
    %258 = vmatpush.msra.mxu0 %v39
    %259 = vmatpush.msra.mxu0 %v37
    %260 = vmatpush.msra.mxu0 %v35
    %261 = vmatpush.msra.mxu0 %v33
    %262 = vmatmul.f32.gmra.mxu0 %v244
    %v263 = vpop.f32.mrf.mxu0
    %v264 = vadd.f32 %v58, %v263
    %265 = vdwg.mxu0
    %266 = vmatpush.msra.mxu0 0.0
    %267 = vmatpush.msra.mxu0 0.0
    %268 = vmatpush.msra.mxu0 0.0
    %269 = vmatpush.msra.mxu0 0.0
    %270 = vmatpush.msra.mxu0 0.0
    %271 = vmatpush.msra.mxu0 0.0
    %272 = vmatpush.msra.mxu0 0.0
    %273 = vmatpush.msra.mxu0 0.0
    %274 = vmatpush.msra.mxu0 %v48
    %275 = vmatpush.msra.mxu0 %v46
    %276 = vmatpush.msra.mxu0 %v44
    %277 = vmatpush.msra.mxu0 %v42
    %278 = vmatpush.msra.mxu0 %v40
    %279 = vmatpush.msra.mxu0 %v38
    %280 = vmatpush.msra.mxu0 %v36
    %281 = vmatpush.msra.mxu0 %v34
    %282 = vmatmul.f32.gmra.mxu0 %v244
    %v283 = vpop.f32.mrf.mxu0
    %v284 = vadd.f32 %v59, %v283
    %285 = vdwg.mxu0
    %v286 = vsel %vm53, %v264, %v284
    %v287 = vxor.u32 %v286, 2147483648
    %v288 = vmul.f32 %v287, 1.442695
    %v289 = vpow.pop %v288
    %v290 = vadd.f32 %v289, 1.0
    %v291 = vrcp.pop %v290
    %v292 = vmul.f32 %v290, %v291
    %v293 = vsub.f32 1.0, %v292
    %v294 = vmul.f32 %v291, %v293
    %v295 = vadd.f32 %v291, %v294
    %vm296 = vweird.f32 %v290
    %vm297 = vweird.f32 %v291
    %vm298 = vmor %vm296, %vm297
    %v299 = vsel %vm298, %v291, %v295
    %v300 = vand.u32 2147483647, %v290
    %vm301 = vcmp.eq.f32.partialorder %v300, 8.507059e+37
    %v302 = vand.u32 %v290, 2147483648
    %v303 = vor.u32 1.1754944e-38, %v302
    %v304 = vsel %vm301, %v303, %v299
    %v305 = vmul.f32 1.0, %v304
    %v306 = vtanh.pop %v286
    %v307 = vmul.f32 %v305, %v227
    %309 = vrot.lane.b32.xlu0 %v306, 64
    %v310 = vpop.permute.xlu0 %309
    %v312 = vmul.f32 %v305, %v310
    %314 = vrot.lane.b32.xlu0 %v312, 32
    %v315 = vpop.permute.xlu0 %314
    %v317 = vadd.f32 %v307, %v315
    %v318 = vtanh.pop %v317
    %320 = vrot.lane.b32.xlu0 %v318, 64
    %v321 = vpop.permute.xlu0 %320
    %v323 = vmul.f32 %v305, %v321
    %v325 = vperm.slane %v29, 0
    %v327 = vsel %vm53, %v28, %v325
    %329 = vrot.lane.b32.xlu0 %v323, 64
    %v330 = vpop.permute.xlu0 %329
    %v332 = vsel %vm55, %v327, %v330
    %v334 = vsel %vm62, %v332, 0
    %336 = vmatpush.msra.mxu0 0.0
    %337 = vmatpush.msra.mxu0 0.0
    %338 = vmatpush.msra.mxu0 0.0
    %339 = vmatpush.msra.mxu0 0.0
    %340 = vmatpush.msra.mxu0 0.0
    %341 = vmatpush.msra.mxu0 0.0
    %342 = vmatpush.msra.mxu0 0.0
    %343 = vmatpush.msra.mxu0 0.0
    %344 = vmatpush.msra.mxu0 %v47
    %345 = vmatpush.msra.mxu0 %v45
    %346 = vmatpush.msra.mxu0 %v43
    %347 = vmatpush.msra.mxu0 %v41
    %348 = vmatpush.msra.mxu0 %v39
    %349 = vmatpush.msra.mxu0 %v37
    %350 = vmatpush.msra.mxu0 %v35
    %351 = vmatpush.msra.mxu0 %v33
    %352 = vmatmul.f32.gmra.mxu0 %v334
    %v353 = vpop.f32.mrf.mxu0
    %v354 = vadd.f32 %v58, %v353
    %355 = vdwg.mxu0
    %356 = vmatpush.msra.mxu0 0.0
    %357 = vmatpush.msra.mxu0 0.0
    %358 = vmatpush.msra.mxu0 0.0
    %359 = vmatpush.msra.mxu0 0.0
    %360 = vmatpush.msra.mxu0 0.0
    %361 = vmatpush.msra.mxu0 0.0
    %362 = vmatpush.msra.mxu0 0.0
    %363 = vmatpush.msra.mxu0 0.0
    %364 = vmatpush.msra.mxu0 %v48
    %365 = vmatpush.msra.mxu0 %v46
    %366 = vmatpush.msra.mxu0 %v44
    %367 = vmatpush.msra.mxu0 %v42
    %368 = vmatpush.msra.mxu0 %v40
    %369 = vmatpush.msra.mxu0 %v38
    %370 = vmatpush.msra.mxu0 %v36
    %371 = vmatpush.msra.mxu0 %v34
    %372 = vmatmul.f32.gmra.mxu0 %v334
    %v373 = vpop.f32.mrf.mxu0
    %v374 = vadd.f32 %v59, %v373
    %375 = vdwg.mxu0
    %v376 = vsel %vm53, %v354, %v374
    %v377 = vxor.u32 %v376, 2147483648
    %v378 = vmul.f32 %v377, 1.442695
    %v379 = vpow.pop %v378
    %v380 = vadd.f32 %v379, 1.0
    %v381 = vrcp.pop %v380
    %v382 = vmul.f32 %v380, %v381
    %v383 = vsub.f32 1.0, %v382
    %v384 = vmul.f32 %v381, %v383
    %v385 = vadd.f32 %v381, %v384
    %vm386 = vweird.f32 %v380
    %vm387 = vweird.f32 %v381
    %vm388 = vmor %vm386, %vm387
    %v389 = vsel %vm388, %v381, %v385
    %v390 = vand.u32 2147483647, %v380
    %vm391 = vcmp.eq.f32.partialorder %v390, 8.507059e+37
    %v392 = vand.u32 %v380, 2147483648
    %v393 = vor.u32 1.1754944e-38, %v392
    %v394 = vsel %vm391, %v393, %v389
    %v395 = vmul.f32 1.0, %v394
    %v396 = vtanh.pop %v376
    %v397 = vmul.f32 %v395, %v317
    %399 = vrot.lane.b32.xlu0 %v396, 64
    %v400 = vpop.permute.xlu0 %399
    %v402 = vmul.f32 %v395, %v400
    %404 = vrot.lane.b32.xlu0 %v402, 32
    %v405 = vpop.permute.xlu0 %404
    %v407 = vadd.f32 %v397, %v405
    %v408 = vtanh.pop %v407
    %410 = vrot.lane.b32.xlu0 %v408, 64
    %v411 = vpop.permute.xlu0 %410
    %v413 = vmul.f32 %v395, %v411
    %v415 = vperm.slane %v28, 0
    %v417 = vsel %vm53, %v29, %v415
    %419 = vrot.lane.b32.xlu0 %v413, 64
    %v420 = vpop.permute.xlu0 %419
    %v422 = vsel %vm55, %v417, %v420
    %v424 = vsel %vm62, %v422, 0
    %426 = vmatpush.msra.mxu0 0.0
    %427 = vmatpush.msra.mxu0 0.0
    %428 = vmatpush.msra.mxu0 0.0
    %429 = vmatpush.msra.mxu0 0.0
    %430 = vmatpush.msra.mxu0 0.0
    %431 = vmatpush.msra.mxu0 0.0
    %432 = vmatpush.msra.mxu0 0.0
    %433 = vmatpush.msra.mxu0 0.0
    %434 = vmatpush.msra.mxu0 %v47
    %435 = vmatpush.msra.mxu0 %v45
    %436 = vmatpush.msra.mxu0 %v43
    %437 = vmatpush.msra.mxu0 %v41
    %438 = vmatpush.msra.mxu0 %v39
    %439 = vmatpush.msra.mxu0 %v37
    %440 = vmatpush.msra.mxu0 %v35
    %441 = vmatpush.msra.mxu0 %v33
    %442 = vmatmul.f32.gmra.mxu0 %v424
    %v443 = vpop.f32.mrf.mxu0
    %v444 = vadd.f32 %v58, %v443
    %445 = vdwg.mxu0
    %446 = vmatpush.msra.mxu0 0.0
    %447 = vmatpush.msra.mxu0 0.0
    %448 = vmatpush.msra.mxu0 0.0
    %449 = vmatpush.msra.mxu0 0.0
    %450 = vmatpush.msra.mxu0 0.0
    %451 = vmatpush.msra.mxu0 0.0
    %452 = vmatpush.msra.mxu0 0.0
    %453 = vmatpush.msra.mxu0 0.0
    %454 = vmatpush.msra.mxu0 %v48
    %455 = vmatpush.msra.mxu0 %v46
    %456 = vmatpush.msra.mxu0 %v44
    %457 = vmatpush.msra.mxu0 %v42
    %458 = vmatpush.msra.mxu0 %v40
    %459 = vmatpush.msra.mxu0 %v38
    %460 = vmatpush.msra.mxu0 %v36
    %461 = vmatpush.msra.mxu0 %v34
    %462 = vmatmul.f32.gmra.mxu0 %v424
    %v463 = vpop.f32.mrf.mxu0
    %v464 = vadd.f32 %v59, %v463
    %465 = vdwg.mxu0
    %v466 = vsel %vm53, %v444, %v464
    %v467 = vxor.u32 %v466, 2147483648
    %v468 = vmul.f32 %v467, 1.442695
    %v469 = vpow.pop %v468
    %v470 = vadd.f32 %v469, 1.0
    %v471 = vrcp.pop %v470
    %v472 = vmul.f32 %v470, %v471
    %v473 = vsub.f32 1.0, %v472
    %v474 = vmul.f32 %v471, %v473
    %v475 = vadd.f32 %v471, %v474
    %vm476 = vweird.f32 %v470
    %vm477 = vweird.f32 %v471
    %vm478 = vmor %vm476, %vm477
    %v479 = vsel %vm478, %v471, %v475
    %v480 = vand.u32 2147483647, %v470
    %vm481 = vcmp.eq.f32.partialorder %v480, 8.507059e+37
    %v482 = vand.u32 %v470, 2147483648
    %v483 = vor.u32 1.1754944e-38, %v482
    %v484 = vsel %vm481, %v483, %v479
    %v485 = vmul.f32 1.0, %v484
    %v486 = vtanh.pop %v466
    %v487 = vmul.f32 %v485, %v407
    %489 = vrot.lane.b32.xlu0 %v486, 64
    %v490 = vpop.permute.xlu0 %489
    %v492 = vmul.f32 %v485, %v490
    %494 = vrot.lane.b32.xlu0 %v492, 32
    %v495 = vpop.permute.xlu0 %494
    %v497 = vadd.f32 %v487, %v495
    %v498 = vtanh.pop %v497
    %500 = vrot.lane.b32.xlu0 %v498, 64
    %v501 = vpop.permute.xlu0 %500
    %v503 = vmul.f32 %v485, %v501
    %v505 = vperm.slane %v27, 0
    %v507 = vsel %vm53, %v30, %v505
    %509 = vrot.lane.b32.xlu0 %v503, 64
    %v510 = vpop.permute.xlu0 %509
    %v512 = vsel %vm55, %v507, %v510
    %v514 = vsel %vm62, %v512, 0
    %516 = vmatpush.msra.mxu0 0.0
    %517 = vmatpush.msra.mxu0 0.0
    %518 = vmatpush.msra.mxu0 0.0
    %519 = vmatpush.msra.mxu0 0.0
    %520 = vmatpush.msra.mxu0 0.0
    %521 = vmatpush.msra.mxu0 0.0
    %522 = vmatpush.msra.mxu0 0.0
    %523 = vmatpush.msra.mxu0 0.0
    %524 = vmatpush.msra.mxu0 %v47
    %525 = vmatpush.msra.mxu0 %v45
    %526 = vmatpush.msra.mxu0 %v43
    %527 = vmatpush.msra.mxu0 %v41
    %528 = vmatpush.msra.mxu0 %v39
    %529 = vmatpush.msra.mxu0 %v37
    %530 = vmatpush.msra.mxu0 %v35
    %531 = vmatpush.msra.mxu0 %v33
    %532 = vmatmul.f32.gmra.mxu0 %v514
    %v533 = vpop.f32.mrf.mxu0
    %v534 = vadd.f32 %v58, %v533
    %535 = vdwg.mxu0
    %536 = vmatpush.msra.mxu0 0.0
    %537 = vmatpush.msra.mxu0 0.0
    %538 = vmatpush.msra.mxu0 0.0
    %539 = vmatpush.msra.mxu0 0.0
    %540 = vmatpush.msra.mxu0 0.0
    %541 = vmatpush.msra.mxu0 0.0
    %542 = vmatpush.msra.mxu0 0.0
    %543 = vmatpush.msra.mxu0 0.0
    %544 = vmatpush.msra.mxu0 %v48
    %545 = vmatpush.msra.mxu0 %v46
    %546 = vmatpush.msra.mxu0 %v44
    %547 = vmatpush.msra.mxu0 %v42
    %548 = vmatpush.msra.mxu0 %v40
    %549 = vmatpush.msra.mxu0 %v38
    %550 = vmatpush.msra.mxu0 %v36
    %551 = vmatpush.msra.mxu0 %v34
    %552 = vmatmul.f32.gmra.mxu0 %v514
    %v553 = vpop.f32.mrf.mxu0
    %v554 = vadd.f32 %v59, %v553
    %555 = vdwg.mxu0
    %v556 = vsel %vm53, %v534, %v554
    %v557 = vxor.u32 %v556, 2147483648
    %v558 = vmul.f32 %v557, 1.442695
    %v559 = vpow.pop %v558
    %v560 = vadd.f32 %v559, 1.0
    %v561 = vrcp.pop %v560
    %v562 = vmul.f32 %v560, %v561
    %v563 = vsub.f32 1.0, %v562
    %v564 = vmul.f32 %v561, %v563
    %v565 = vadd.f32 %v561, %v564
    %vm566 = vweird.f32 %v560
    %vm567 = vweird.f32 %v561
    %vm568 = vmor %vm566, %vm567
    %v569 = vsel %vm568, %v561, %v565
    %v570 = vand.u32 2147483647, %v560
    %vm571 = vcmp.eq.f32.partialorder %v570, 8.507059e+37
    %v572 = vand.u32 %v560, 2147483648
    %v573 = vor.u32 1.1754944e-38, %v572
    %v574 = vsel %vm571, %v573, %v569
    %v575 = vmul.f32 1.0, %v574
    %v576 = vtanh.pop %v556
    %v577 = vmul.f32 %v575, %v497
    %579 = vrot.lane.b32.xlu0 %v576, 64
    %v580 = vpop.permute.xlu0 %579
    %v582 = vmul.f32 %v575, %v580
    %584 = vrot.lane.b32.xlu0 %v582, 32
    %v585 = vpop.permute.xlu0 %584
    %v587 = vadd.f32 %v577, %v585
    %v588 = vtanh.pop %v587
    %590 = vrot.lane.b32.xlu0 %v588, 64
    %v591 = vpop.permute.xlu0 %590
    %v593 = vmul.f32 %v575, %v591
    %v595 = vperm.slane %v26, 0
    %v597 = vsel %vm53, %v31, %v595
    %599 = vrot.lane.b32.xlu0 %v593, 64
    %v600 = vpop.permute.xlu0 %599
    %v602 = vsel %vm55, %v597, %v600
    %v604 = vsel %vm62, %v602, 0
    %606 = vmatpush.msra.mxu0 0.0
    %607 = vmatpush.msra.mxu0 0.0
    %608 = vmatpush.msra.mxu0 0.0
    %609 = vmatpush.msra.mxu0 0.0
    %610 = vmatpush.msra.mxu0 0.0
    %611 = vmatpush.msra.mxu0 0.0
    %612 = vmatpush.msra.mxu0 0.0
    %613 = vmatpush.msra.mxu0 0.0
    %614 = vmatpush.msra.mxu0 %v47
    %615 = vmatpush.msra.mxu0 %v45
    %616 = vmatpush.msra.mxu0 %v43
    %617 = vmatpush.msra.mxu0 %v41
    %618 = vmatpush.msra.mxu0 %v39
    %619 = vmatpush.msra.mxu0 %v37
    %620 = vmatpush.msra.mxu0 %v35
    %621 = vmatpush.msra.mxu0 %v33
    %622 = vmatmul.f32.gmra.mxu0 %v604
    %v623 = vpop.f32.mrf.mxu0
    %v624 = vadd.f32 %v58, %v623
    %625 = vdwg.mxu0
    %626 = vmatpush.msra.mxu0 0.0
    %627 = vmatpush.msra.mxu0 0.0
    %628 = vmatpush.msra.mxu0 0.0
    %629 = vmatpush.msra.mxu0 0.0
    %630 = vmatpush.msra.mxu0 0.0
    %631 = vmatpush.msra.mxu0 0.0
    %632 = vmatpush.msra.mxu0 0.0
    %633 = vmatpush.msra.mxu0 0.0
    %634 = vmatpush.msra.mxu0 %v48
    %635 = vmatpush.msra.mxu0 %v46
    %636 = vmatpush.msra.mxu0 %v44
    %637 = vmatpush.msra.mxu0 %v42
    %638 = vmatpush.msra.mxu0 %v40
    %639 = vmatpush.msra.mxu0 %v38
    %640 = vmatpush.msra.mxu0 %v36
    %641 = vmatpush.msra.mxu0 %v34
    %642 = vmatmul.f32.gmra.mxu0 %v604
    %v643 = vpop.f32.mrf.mxu0
    %v644 = vadd.f32 %v59, %v643
    %645 = vdwg.mxu0
    %v646 = vsel %vm53, %v624, %v644
    %v647 = vxor.u32 %v646, 2147483648
    %v648 = vmul.f32 %v647, 1.442695
    %v649 = vpow.pop %v648
    %v650 = vadd.f32 %v649, 1.0
    %v651 = vrcp.pop %v650
    %v652 = vmul.f32 %v650, %v651
    %v653 = vsub.f32 1.0, %v652
    %v654 = vmul.f32 %v651, %v653
    %v655 = vadd.f32 %v651, %v654
    %vm656 = vweird.f32 %v650
    %vm657 = vweird.f32 %v651
    %vm658 = vmor %vm656, %vm657
    %v659 = vsel %vm658, %v651, %v655
    %v660 = vand.u32 2147483647, %v650
    %vm661 = vcmp.eq.f32.partialorder %v660, 8.507059e+37
    %v662 = vand.u32 %v650, 2147483648
    %v663 = vor.u32 1.1754944e-38, %v662
    %v664 = vsel %vm661, %v663, %v659
    %v665 = vmul.f32 1.0, %v664
    %v666 = vtanh.pop %v646
    %v667 = vmul.f32 %v665, %v587
    %669 = vrot.lane.b32.xlu0 %v666, 64
    %v670 = vpop.permute.xlu0 %669
    %v672 = vmul.f32 %v665, %v670
    %674 = vrot.lane.b32.xlu0 %v672, 32
    %v675 = vpop.permute.xlu0 %674
    %v677 = vadd.f32 %v667, %v675
    %v678 = vtanh.pop %v677
    %680 = vrot.lane.b32.xlu0 %v678, 64
    %v681 = vpop.permute.xlu0 %680
    %v683 = vmul.f32 %v665, %v681
    %v685 = vperm.slane %v25, 0
    %v687 = vsel %vm53, %v32, %v685
    %689 = vrot.lane.b32.xlu0 %v683, 64
    %v690 = vpop.permute.xlu0 %689
    %v692 = vsel %vm55, %v687, %v690
    %v694 = vsel %vm62, %v692, 0
    %696 = vmatpush.msra.mxu0 0.0
    %697 = vmatpush.msra.mxu0 0.0
    %698 = vmatpush.msra.mxu0 0.0
    %699 = vmatpush.msra.mxu0 0.0
    %700 = vmatpush.msra.mxu0 0.0
    %701 = vmatpush.msra.mxu0 0.0
    %702 = vmatpush.msra.mxu0 0.0
    %703 = vmatpush.msra.mxu0 0.0
    %704 = vmatpush.msra.mxu0 %v47
    %705 = vmatpush.msra.mxu0 %v45
    %706 = vmatpush.msra.mxu0 %v43
    %707 = vmatpush.msra.mxu0 %v41
    %708 = vmatpush.msra.mxu0 %v39
    %709 = vmatpush.msra.mxu0 %v37
    %710 = vmatpush.msra.mxu0 %v35
    %711 = vmatpush.msra.mxu0 %v33
    %712 = vmatmul.f32.gmra.mxu0 %v694
    %v713 = vpop.f32.mrf.mxu0
    %v714 = vadd.f32 %v58, %v713
    %715 = vdwg.mxu0
    %716 = vmatpush.msra.mxu0 0.0
    %717 = vmatpush.msra.mxu0 0.0
    %718 = vmatpush.msra.mxu0 0.0
    %719 = vmatpush.msra.mxu0 0.0
    %720 = vmatpush.msra.mxu0 0.0
    %721 = vmatpush.msra.mxu0 0.0
    %722 = vmatpush.msra.mxu0 0.0
    %723 = vmatpush.msra.mxu0 0.0
    %724 = vmatpush.msra.mxu0 %v48
    %725 = vmatpush.msra.mxu0 %v46
    %726 = vmatpush.msra.mxu0 %v44
    %727 = vmatpush.msra.mxu0 %v42
    %728 = vmatpush.msra.mxu0 %v40
    %729 = vmatpush.msra.mxu0 %v38
    %730 = vmatpush.msra.mxu0 %v36
    %731 = vmatpush.msra.mxu0 %v34
    %732 = vmatmul.f32.gmra.mxu0 %v694
    %v733 = vpop.f32.mrf.mxu0
    %v734 = vadd.f32 %v59, %v733
    %735 = vdwg.mxu0
    %v736 = vsel %vm53, %v714, %v734
    %v737 = vxor.u32 %v736, 2147483648
    %v738 = vmul.f32 %v737, 1.442695
    %v739 = vpow.pop %v738
    %v740 = vadd.f32 %v739, 1.0
    %v741 = vrcp.pop %v740
    %v742 = vmul.f32 %v740, %v741
    %v743 = vsub.f32 1.0, %v742
    %v744 = vmul.f32 %v741, %v743
    %v745 = vadd.f32 %v741, %v744
    %vm746 = vweird.f32 %v740
    %vm747 = vweird.f32 %v741
    %vm748 = vmor %vm746, %vm747
    %v749 = vsel %vm748, %v741, %v745
    %v750 = vand.u32 2147483647, %v740
    %vm751 = vcmp.eq.f32.partialorder %v750, 8.507059e+37
    %v752 = vand.u32 %v740, 2147483648
    %v753 = vor.u32 1.1754944e-38, %v752
    %v754 = vsel %vm751, %v753, %v749
    %v755 = vmul.f32 1.0, %v754
    %v756 = vtanh.pop %v736
    %v757 = vmul.f32 %v755, %v677
    %759 = vrot.lane.b32.xlu0 %v756, 64
    %v760 = vpop.permute.xlu0 %759
    %v762 = vmul.f32 %v755, %v760
    %764 = vrot.lane.b32.xlu0 %v762, 32
    %v765 = vpop.permute.xlu0 %764
    %v767 = vadd.f32 %v757, %v765
    %v768 = vtanh.pop %v767
    %770 = vrot.lane.b32.xlu0 %v768, 64
    %v771 = vpop.permute.xlu0 %770
    %v773 = vmul.f32 %v755, %v771
    %775 = vrot.lane.b32.xlu0 %v773, 32
    %v776 = vpop.permute.xlu0 %775
    %vm778 = vcmask 253952
    %779 = vst.msk [vmem:[#allocation4] sm:$0x1] %vm778, %v776
    %s780 = scalar_lea.vmem [#allocation4], 1
    %vm781 = vcmask 254977
    %782 = vst.msk [vmem:[%s780 - $0x1] sm:$0x2] %vm781, %v776
    %784 = vrot.lane.b32.xlu0 %v767, 96
    %v785 = vpop.permute.xlu0 %784
    %787 = vst.msk [vmem:[#allocation6] sm:$0x1] %vm778, %v785
    %s788 = scalar_lea.vmem [#allocation6], 1
    %789 = vst.msk [vmem:[%s788 - $0x1] sm:$0x2] %vm781, %v785
    %790 = vrot.lane.b32.xlu0 %v143, 32
    %v791 = vpop.permute.xlu0 %790
    %792 = vrot.lane.b32.xlu0 %v233, 32
    %v793 = vpop.permute.xlu0 %792
    %794 = vrot.lane.b32.xlu0 %v323, 32
    %v795 = vpop.permute.xlu0 %794
    %796 = vrot.lane.b32.xlu0 %v413, 32
    %v797 = vpop.permute.xlu0 %796
    %798 = vrot.lane.b32.xlu0 %v503, 32
    %v799 = vpop.permute.xlu0 %798
    %800 = vrot.lane.b32.xlu0 %v593, 32
    %v801 = vpop.permute.xlu0 %800
    %802 = vrot.lane.b32.xlu0 %v683, 32
    %v803 = vpop.permute.xlu0 %802
    %v811 = vrot.slane %v773, 1
    %v812 = vrot.slane %v683, 1
    %v813 = vrot.slane %v593, 1
    %v814 = vrot.slane %v503, 1
    %v815 = vrot.slane %v413, 1
    %v816 = vrot.slane %v323, 1
    %v817 = vrot.slane %v233, 1
    %v818 = vrot.slane %v143, 1
    %819 = vrot.lane.b32.xlu0 %v811, 64
    %v820 = vpop.permute.xlu0 %819
    %821 = vrot.lane.b32.xlu0 %v812, 64
    %v822 = vpop.permute.xlu0 %821
    %823 = vrot.lane.b32.xlu0 %v813, 64
    %v824 = vpop.permute.xlu0 %823
    %825 = vrot.lane.b32.xlu0 %v814, 64
    %v826 = vpop.permute.xlu0 %825
    %827 = vrot.lane.b32.xlu0 %v815, 64
    %v828 = vpop.permute.xlu0 %827
    %829 = vrot.lane.b32.xlu0 %v816, 64
    %v830 = vpop.permute.xlu0 %829
    %831 = vrot.lane.b32.xlu0 %v817, 64
    %v832 = vpop.permute.xlu0 %831
    %833 = vrot.lane.b32.xlu0 %v818, 64
    %v834 = vpop.permute.xlu0 %833
    %v843 = vsel %vm55, %v791, %v820
    %v844 = vsel %vm55, %v793, %v822
    %v845 = vsel %vm55, %v795, %v824
    %v846 = vsel %vm55, %v797, %v826
    %v847 = vsel %vm55, %v799, %v828
    %v848 = vsel %vm55, %v801, %v830
    %v849 = vsel %vm55, %v803, %v832
    %v850 = vsel %vm55, %v776, %v834
    %v851 = vld [vmem:[%s2] sm:$0xff]
    %v852 = vld [vmem:[%s2 + $0x8] sm:$0xff]
    %v853 = vld [vmem:[%s2 + $0x10] sm:$0xff]
    %v854 = vld [vmem:[%s2 + $0x18] sm:$0xff]
    %v855 = vld [vmem:[%s2 + $0x20] sm:$0xff]
    %v856 = vld [vmem:[%s2 + $0x28] sm:$0xff]
    %v857 = vld [vmem:[%s2 + $0x30] sm:$0xff]
    %v858 = vld [vmem:[%s2 + $0x38] sm:$0xff]
    %v859 = vld [vmem:[%s2 + $0x40] sm:$0xff]
    %v860 = vld [vmem:[%s2 + $0x48] sm:$0xff]
    %v861 = vld [vmem:[%s2 + $0x50] sm:$0xff]
    %v862 = vld [vmem:[%s2 + $0x58] sm:$0xff]
    %v863 = vld [vmem:[%s2 + $0x60] sm:$0xff]
    %v864 = vld [vmem:[%s2 + $0x68] sm:$0xff]
    %v865 = vld [vmem:[%s2 + $0x70] sm:$0xff]
    %v866 = vld [vmem:[%s2 + $0x78] sm:$0xff]
    %v867 = vld [vmem:[%s2 + $0x80] sm:$0xff]
    %v868 = vld [vmem:[%s2 + $0x88] sm:$0xff]
    %v869 = vld [vmem:[%s2 + $0x90] sm:$0xff]
    %v870 = vld [vmem:[%s2 + $0x98] sm:$0xff]
    %v871 = vld [vmem:[%s2 + $0xa0] sm:$0xff]
    %v872 = vld [vmem:[%s2 + $0xa8] sm:$0xff]
    %v873 = vld [vmem:[%s2 + $0xb0] sm:$0xff]
    %v874 = vld [vmem:[%s2 + $0xb8] sm:$0xff]
    %v875 = vld [vmem:[%s4] sm:$0x3]
    %v877 = vrot.slane %v850, 7
    %v879 = vsel %vm53, %v843, %v877
    %v880 = vsel %vm62, %v879, 0.0
    %v882 = vperm.slane %v875, 0
    %v883 = vperm.slane %v875, 1
    %vm886 = vcmask 785408
    %v888 = vsel %vm886, %v880, 0
    %890 = vmatpush.msra.mxu0 0.0
    %891 = vmatpush.msra.mxu0 0.0
    %892 = vmatpush.msra.mxu0 0.0
    %893 = vmatpush.msra.mxu0 0.0
    %894 = vmatpush.msra.mxu0 %v873
    %895 = vmatpush.msra.mxu0 %v871
    %896 = vmatpush.msra.mxu0 %v869
    %897 = vmatpush.msra.mxu0 %v867
    %898 = vmatpush.msra.mxu0 %v865
    %899 = vmatpush.msra.mxu0 %v863
    %900 = vmatpush.msra.mxu0 %v861
    %901 = vmatpush.msra.mxu0 %v859
    %902 = vmatpush.msra.mxu0 %v857
    %903 = vmatpush.msra.mxu0 %v855
    %904 = vmatpush.msra.mxu0 %v853
    %905 = vmatpush.msra.mxu0 %v851
    %906 = vmatmul.f32.gmra.mxu0 %v888
    %v907 = vpop.f32.mrf.mxu0
    %v908 = vadd.f32 %v882, %v907
    %909 = vdwg.mxu0
    %910 = vmatpush.msra.mxu0 0.0
    %911 = vmatpush.msra.mxu0 0.0
    %912 = vmatpush.msra.mxu0 0.0
    %913 = vmatpush.msra.mxu0 0.0
    %914 = vmatpush.msra.mxu0 %v874
    %915 = vmatpush.msra.mxu0 %v872
    %916 = vmatpush.msra.mxu0 %v870
    %917 = vmatpush.msra.mxu0 %v868
    %918 = vmatpush.msra.mxu0 %v866
    %919 = vmatpush.msra.mxu0 %v864
    %920 = vmatpush.msra.mxu0 %v862
    %921 = vmatpush.msra.mxu0 %v860
    %922 = vmatpush.msra.mxu0 %v858
    %923 = vmatpush.msra.mxu0 %v856
    %924 = vmatpush.msra.mxu0 %v854
    %925 = vmatpush.msra.mxu0 %v852
    %926 = vmatmul.f32.gmra.mxu0 %v888
    %v927 = vpop.f32.mrf.mxu0
    %v928 = vadd.f32 %v883, %v927
    %929 = vdwg.mxu0
    %v930 = vsel %vm53, %v908, %v928
    %v931 = vxor.u32 %v930, 2147483648
    %v932 = vmul.f32 %v931, 1.442695
    %v933 = vpow.pop %v932
    %v934 = vadd.f32 %v933, 1.0
    %v935 = vrcp.pop %v934
    %v936 = vmul.f32 %v934, %v935
    %v937 = vsub.f32 1.0, %v936
    %v938 = vmul.f32 %v935, %v937
    %v939 = vadd.f32 %v935, %v938
    %vm940 = vweird.f32 %v934
    %vm941 = vweird.f32 %v935
    %vm942 = vmor %vm940, %vm941
    %v943 = vsel %vm942, %v935, %v939
    %v944 = vand.u32 2147483647, %v934
    %vm945 = vcmp.eq.f32.partialorder %v944, 8.507059e+37
    %v946 = vand.u32 %v934, 2147483648
    %v947 = vor.u32 1.1754944e-38, %v946
    %v948 = vsel %vm945, %v947, %v943
    %v949 = vmul.f32 1.0, %v948
    %v950 = vtanh.pop %v930
    %v951 = vmul.f32 %v949, 0.0
    %953 = vrot.lane.b32.xlu0 %v950, 64
    %v954 = vpop.permute.xlu0 %953
    %v956 = vmul.f32 %v949, %v954
    %958 = vrot.lane.b32.xlu0 %v956, 32
    %v959 = vpop.permute.xlu0 %958
    %v961 = vadd.f32 %v951, %v959
    %v962 = vtanh.pop %v961
    %964 = vrot.lane.b32.xlu0 %v962, 64
    %v965 = vpop.permute.xlu0 %964
    %v967 = vmul.f32 %v949, %v965
    %v969 = vrot.slane %v849, 7
    %v971 = vsel %vm53, %v844, %v969
    %973 = vrot.lane.b32.xlu0 %v967, 96
    %v974 = vpop.permute.xlu0 %973
    %v976 = vsel %vm62, %v971, %v974
    %v978 = vsel %vm886, %v976, 0
    %980 = vmatpush.msra.mxu0 0.0
    %981 = vmatpush.msra.mxu0 0.0
    %982 = vmatpush.msra.mxu0 0.0
    %983 = vmatpush.msra.mxu0 0.0
    %984 = vmatpush.msra.mxu0 %v873
    %985 = vmatpush.msra.mxu0 %v871
    %986 = vmatpush.msra.mxu0 %v869
    %987 = vmatpush.msra.mxu0 %v867
    %988 = vmatpush.msra.mxu0 %v865
    %989 = vmatpush.msra.mxu0 %v863
    %990 = vmatpush.msra.mxu0 %v861
    %991 = vmatpush.msra.mxu0 %v859
    %992 = vmatpush.msra.mxu0 %v857
    %993 = vmatpush.msra.mxu0 %v855
    %994 = vmatpush.msra.mxu0 %v853
    %995 = vmatpush.msra.mxu0 %v851
    %996 = vmatmul.f32.gmra.mxu0 %v978
    %v997 = vpop.f32.mrf.mxu0
    %v998 = vadd.f32 %v882, %v997
    %999 = vdwg.mxu0
    %1000 = vmatpush.msra.mxu0 0.0
    %1001 = vmatpush.msra.mxu0 0.0
    %1002 = vmatpush.msra.mxu0 0.0
    %1003 = vmatpush.msra.mxu0 0.0
    %1004 = vmatpush.msra.mxu0 %v874
    %1005 = vmatpush.msra.mxu0 %v872
    %1006 = vmatpush.msra.mxu0 %v870
    %1007 = vmatpush.msra.mxu0 %v868
    %1008 = vmatpush.msra.mxu0 %v866
    %1009 = vmatpush.msra.mxu0 %v864
    %1010 = vmatpush.msra.mxu0 %v862
    %1011 = vmatpush.msra.mxu0 %v860
    %1012 = vmatpush.msra.mxu0 %v858
    %1013 = vmatpush.msra.mxu0 %v856
    %1014 = vmatpush.msra.mxu0 %v854
    %1015 = vmatpush.msra.mxu0 %v852
    %1016 = vmatmul.f32.gmra.mxu0 %v978
    %v1017 = vpop.f32.mrf.mxu0
    %v1018 = vadd.f32 %v883, %v1017
    %1019 = vdwg.mxu0
    %v1020 = vsel %vm53, %v998, %v1018
    %v1021 = vxor.u32 %v1020, 2147483648
    %v1022 = vmul.f32 %v1021, 1.442695
    %v1023 = vpow.pop %v1022
    %v1024 = vadd.f32 %v1023, 1.0
    %v1025 = vrcp.pop %v1024
    %v1026 = vmul.f32 %v1024, %v1025
    %v1027 = vsub.f32 1.0, %v1026
    %v1028 = vmul.f32 %v1025, %v1027
    %v1029 = vadd.f32 %v1025, %v1028
    %vm1030 = vweird.f32 %v1024
    %vm1031 = vweird.f32 %v1025
    %vm1032 = vmor %vm1030, %vm1031
    %v1033 = vsel %vm1032, %v1025, %v1029
    %v1034 = vand.u32 2147483647, %v1024
    %vm1035 = vcmp.eq.f32.partialorder %v1034, 8.507059e+37
    %v1036 = vand.u32 %v1024, 2147483648
    %v1037 = vor.u32 1.1754944e-38, %v1036
    %v1038 = vsel %vm1035, %v1037, %v1033
    %v1039 = vmul.f32 1.0, %v1038
    %v1040 = vtanh.pop %v1020
    %v1041 = vmul.f32 %v1039, %v961
    %1043 = vrot.lane.b32.xlu0 %v1040, 64
    %v1044 = vpop.permute.xlu0 %1043
    %v1046 = vmul.f32 %v1039, %v1044
    %1048 = vrot.lane.b32.xlu0 %v1046, 32
    %v1049 = vpop.permute.xlu0 %1048
    %v1051 = vadd.f32 %v1041, %v1049
    %v1052 = vtanh.pop %v1051
    %1054 = vrot.lane.b32.xlu0 %v1052, 64
    %v1055 = vpop.permute.xlu0 %1054
    %v1057 = vmul.f32 %v1039, %v1055
    %v1059 = vrot.slane %v848, 7
    %v1061 = vsel %vm53, %v845, %v1059
    %1063 = vrot.lane.b32.xlu0 %v1057, 96
    %v1064 = vpop.permute.xlu0 %1063
    %v1066 = vsel %vm62, %v1061, %v1064
    %v1068 = vsel %vm886, %v1066, 0
    %1070 = vmatpush.msra.mxu0 0.0
    %1071 = vmatpush.msra.mxu0 0.0
    %1072 = vmatpush.msra.mxu0 0.0
    %1073 = vmatpush.msra.mxu0 0.0
    %1074 = vmatpush.msra.mxu0 %v873
    %1075 = vmatpush.msra.mxu0 %v871
    %1076 = vmatpush.msra.mxu0 %v869
    %1077 = vmatpush.msra.mxu0 %v867
    %1078 = vmatpush.msra.mxu0 %v865
    %1079 = vmatpush.msra.mxu0 %v863
    %1080 = vmatpush.msra.mxu0 %v861
    %1081 = vmatpush.msra.mxu0 %v859
    %1082 = vmatpush.msra.mxu0 %v857
    %1083 = vmatpush.msra.mxu0 %v855
    %1084 = vmatpush.msra.mxu0 %v853
    %1085 = vmatpush.msra.mxu0 %v851
    %1086 = vmatmul.f32.gmra.mxu0 %v1068
    %v1087 = vpop.f32.mrf.mxu0
    %v1088 = vadd.f32 %v882, %v1087
    %1089 = vdwg.mxu0
    %1090 = vmatpush.msra.mxu0 0.0
    %1091 = vmatpush.msra.mxu0 0.0
    %1092 = vmatpush.msra.mxu0 0.0
    %1093 = vmatpush.msra.mxu0 0.0
    %1094 = vmatpush.msra.mxu0 %v874
    %1095 = vmatpush.msra.mxu0 %v872
    %1096 = vmatpush.msra.mxu0 %v870
    %1097 = vmatpush.msra.mxu0 %v868
    %1098 = vmatpush.msra.mxu0 %v866
    %1099 = vmatpush.msra.mxu0 %v864
    %1100 = vmatpush.msra.mxu0 %v862
    %1101 = vmatpush.msra.mxu0 %v860
    %1102 = vmatpush.msra.mxu0 %v858
    %1103 = vmatpush.msra.mxu0 %v856
    %1104 = vmatpush.msra.mxu0 %v854
    %1105 = vmatpush.msra.mxu0 %v852
    %1106 = vmatmul.f32.gmra.mxu0 %v1068
    %v1107 = vpop.f32.mrf.mxu0
    %v1108 = vadd.f32 %v883, %v1107
    %1109 = vdwg.mxu0
    %v1110 = vsel %vm53, %v1088, %v1108
    %v1111 = vxor.u32 %v1110, 2147483648
    %v1112 = vmul.f32 %v1111, 1.442695
    %v1113 = vpow.pop %v1112
    %v1114 = vadd.f32 %v1113, 1.0
    %v1115 = vrcp.pop %v1114
    %v1116 = vmul.f32 %v1114, %v1115
    %v1117 = vsub.f32 1.0, %v1116
    %v1118 = vmul.f32 %v1115, %v1117
    %v1119 = vadd.f32 %v1115, %v1118
    %vm1120 = vweird.f32 %v1114
    %vm1121 = vweird.f32 %v1115
    %vm1122 = vmor %vm1120, %vm1121
    %v1123 = vsel %vm1122, %v1115, %v1119
    %v1124 = vand.u32 2147483647, %v1114
    %vm1125 = vcmp.eq.f32.partialorder %v1124, 8.507059e+37
    %v1126 = vand.u32 %v1114, 2147483648
    %v1127 = vor.u32 1.1754944e-38, %v1126
    %v1128 = vsel %vm1125, %v1127, %v1123
    %v1129 = vmul.f32 1.0, %v1128
    %v1130 = vtanh.pop %v1110
    %v1131 = vmul.f32 %v1129, %v1051
    %1133 = vrot.lane.b32.xlu0 %v1130, 64
    %v1134 = vpop.permute.xlu0 %1133
    %v1136 = vmul.f32 %v1129, %v1134
    %1138 = vrot.lane.b32.xlu0 %v1136, 32
    %v1139 = vpop.permute.xlu0 %1138
    %v1141 = vadd.f32 %v1131, %v1139
    %v1142 = vtanh.pop %v1141
    %1144 = vrot.lane.b32.xlu0 %v1142, 64
    %v1145 = vpop.permute.xlu0 %1144
    %v1147 = vmul.f32 %v1129, %v1145
    %v1149 = vrot.slane %v847, 7
    %v1151 = vsel %vm53, %v846, %v1149
    %1153 = vrot.lane.b32.xlu0 %v1147, 96
    %v1154 = vpop.permute.xlu0 %1153
    %v1156 = vsel %vm62, %v1151, %v1154
    %v1158 = vsel %vm886, %v1156, 0
    %1160 = vmatpush.msra.mxu0 0.0
    %1161 = vmatpush.msra.mxu0 0.0
    %1162 = vmatpush.msra.mxu0 0.0
    %1163 = vmatpush.msra.mxu0 0.0
    %1164 = vmatpush.msra.mxu0 %v873
    %1165 = vmatpush.msra.mxu0 %v871
    %1166 = vmatpush.msra.mxu0 %v869
    %1167 = vmatpush.msra.mxu0 %v867
    %1168 = vmatpush.msra.mxu0 %v865
    %1169 = vmatpush.msra.mxu0 %v863
    %1170 = vmatpush.msra.mxu0 %v861
    %1171 = vmatpush.msra.mxu0 %v859
    %1172 = vmatpush.msra.mxu0 %v857
    %1173 = vmatpush.msra.mxu0 %v855
    %1174 = vmatpush.msra.mxu0 %v853
    %1175 = vmatpush.msra.mxu0 %v851
    %1176 = vmatmul.f32.gmra.mxu0 %v1158
    %v1177 = vpop.f32.mrf.mxu0
    %v1178 = vadd.f32 %v882, %v1177
    %1179 = vdwg.mxu0
    %1180 = vmatpush.msra.mxu0 0.0
    %1181 = vmatpush.msra.mxu0 0.0
    %1182 = vmatpush.msra.mxu0 0.0
    %1183 = vmatpush.msra.mxu0 0.0
    %1184 = vmatpush.msra.mxu0 %v874
    %1185 = vmatpush.msra.mxu0 %v872
    %1186 = vmatpush.msra.mxu0 %v870
    %1187 = vmatpush.msra.mxu0 %v868
    %1188 = vmatpush.msra.mxu0 %v866
    %1189 = vmatpush.msra.mxu0 %v864
    %1190 = vmatpush.msra.mxu0 %v862
    %1191 = vmatpush.msra.mxu0 %v860
    %1192 = vmatpush.msra.mxu0 %v858
    %1193 = vmatpush.msra.mxu0 %v856
    %1194 = vmatpush.msra.mxu0 %v854
    %1195 = vmatpush.msra.mxu0 %v852
    %1196 = vmatmul.f32.gmra.mxu0 %v1158
    %v1197 = vpop.f32.mrf.mxu0
    %v1198 = vadd.f32 %v883, %v1197
    %1199 = vdwg.mxu0
    %v1200 = vsel %vm53, %v1178, %v1198
    %v1201 = vxor.u32 %v1200, 2147483648
    %v1202 = vmul.f32 %v1201, 1.442695
    %v1203 = vpow.pop %v1202
    %v1204 = vadd.f32 %v1203, 1.0
    %v1205 = vrcp.pop %v1204
    %v1206 = vmul.f32 %v1204, %v1205
    %v1207 = vsub.f32 1.0, %v1206
    %v1208 = vmul.f32 %v1205, %v1207
    %v1209 = vadd.f32 %v1205, %v1208
    %vm1210 = vweird.f32 %v1204
    %vm1211 = vweird.f32 %v1205
    %vm1212 = vmor %vm1210, %vm1211
    %v1213 = vsel %vm1212, %v1205, %v1209
    %v1214 = vand.u32 2147483647, %v1204
    %vm1215 = vcmp.eq.f32.partialorder %v1214, 8.507059e+37
    %v1216 = vand.u32 %v1204, 2147483648
    %v1217 = vor.u32 1.1754944e-38, %v1216
    %v1218 = vsel %vm1215, %v1217, %v1213
    %v1219 = vmul.f32 1.0, %v1218
    %v1220 = vtanh.pop %v1200
    %v1221 = vmul.f32 %v1219, %v1141
    %1223 = vrot.lane.b32.xlu0 %v1220, 64
    %v1224 = vpop.permute.xlu0 %1223
    %v1226 = vmul.f32 %v1219, %v1224
    %1228 = vrot.lane.b32.xlu0 %v1226, 32
    %v1229 = vpop.permute.xlu0 %1228
    %v1231 = vadd.f32 %v1221, %v1229
    %v1232 = vtanh.pop %v1231
    %1234 = vrot.lane.b32.xlu0 %v1232, 64
    %v1235 = vpop.permute.xlu0 %1234
    %v1237 = vmul.f32 %v1219, %v1235
    %v1239 = vrot.slane %v846, 7
    %v1241 = vsel %vm53, %v847, %v1239
    %1243 = vrot.lane.b32.xlu0 %v1237, 96
    %v1244 = vpop.permute.xlu0 %1243
    %v1246 = vsel %vm62, %v1241, %v1244
    %v1248 = vsel %vm886, %v1246, 0
    %1250 = vmatpush.msra.mxu0 0.0
    %1251 = vmatpush.msra.mxu0 0.0
    %1252 = vmatpush.msra.mxu0 0.0
    %1253 = vmatpush.msra.mxu0 0.0
    %1254 = vmatpush.msra.mxu0 %v873
    %1255 = vmatpush.msra.mxu0 %v871
    %1256 = vmatpush.msra.mxu0 %v869
    %1257 = vmatpush.msra.mxu0 %v867
    %1258 = vmatpush.msra.mxu0 %v865
    %1259 = vmatpush.msra.mxu0 %v863
    %1260 = vmatpush.msra.mxu0 %v861
    %1261 = vmatpush.msra.mxu0 %v859
    %1262 = vmatpush.msra.mxu0 %v857
    %1263 = vmatpush.msra.mxu0 %v855
    %1264 = vmatpush.msra.mxu0 %v853
    %1265 = vmatpush.msra.mxu0 %v851
    %1266 = vmatmul.f32.gmra.mxu0 %v1248
    %v1267 = vpop.f32.mrf.mxu0
    %v1268 = vadd.f32 %v882, %v1267
    %1269 = vdwg.mxu0
    %1270 = vmatpush.msra.mxu0 0.0
    %1271 = vmatpush.msra.mxu0 0.0
    %1272 = vmatpush.msra.mxu0 0.0
    %1273 = vmatpush.msra.mxu0 0.0
    %1274 = vmatpush.msra.mxu0 %v874
    %1275 = vmatpush.msra.mxu0 %v872
    %1276 = vmatpush.msra.mxu0 %v870
    %1277 = vmatpush.msra.mxu0 %v868
    %1278 = vmatpush.msra.mxu0 %v866
    %1279 = vmatpush.msra.mxu0 %v864
    %1280 = vmatpush.msra.mxu0 %v862
    %1281 = vmatpush.msra.mxu0 %v860
    %1282 = vmatpush.msra.mxu0 %v858
    %1283 = vmatpush.msra.mxu0 %v856
    %1284 = vmatpush.msra.mxu0 %v854
    %1285 = vmatpush.msra.mxu0 %v852
    %1286 = vmatmul.f32.gmra.mxu0 %v1248
    %v1287 = vpop.f32.mrf.mxu0
    %v1288 = vadd.f32 %v883, %v1287
    %1289 = vdwg.mxu0
    %v1290 = vsel %vm53, %v1268, %v1288
    %v1291 = vxor.u32 %v1290, 2147483648
    %v1292 = vmul.f32 %v1291, 1.442695
    %v1293 = vpow.pop %v1292
    %v1294 = vadd.f32 %v1293, 1.0
    %v1295 = vrcp.pop %v1294
    %v1296 = vmul.f32 %v1294, %v1295
    %v1297 = vsub.f32 1.0, %v1296
    %v1298 = vmul.f32 %v1295, %v1297
    %v1299 = vadd.f32 %v1295, %v1298
    %vm1300 = vweird.f32 %v1294
    %vm1301 = vweird.f32 %v1295
    %vm1302 = vmor %vm1300, %vm1301
    %v1303 = vsel %vm1302, %v1295, %v1299
    %v1304 = vand.u32 2147483647, %v1294
    %vm1305 = vcmp.eq.f32.partialorder %v1304, 8.507059e+37
    %v1306 = vand.u32 %v1294, 2147483648
    %v1307 = vor.u32 1.1754944e-38, %v1306
    %v1308 = vsel %vm1305, %v1307, %v1303
    %v1309 = vmul.f32 1.0, %v1308
    %v1310 = vtanh.pop %v1290
    %v1311 = vmul.f32 %v1309, %v1231
    %1313 = vrot.lane.b32.xlu0 %v1310, 64
    %v1314 = vpop.permute.xlu0 %1313
    %v1316 = vmul.f32 %v1309, %v1314
    %1318 = vrot.lane.b32.xlu0 %v1316, 32
    %v1319 = vpop.permute.xlu0 %1318
    %v1321 = vadd.f32 %v1311, %v1319
    %v1322 = vtanh.pop %v1321
    %1324 = vrot.lane.b32.xlu0 %v1322, 64
    %v1325 = vpop.permute.xlu0 %1324
    %v1327 = vmul.f32 %v1309, %v1325
    %v1329 = vrot.slane %v845, 7
    %v1331 = vsel %vm53, %v848, %v1329
    %1333 = vrot.lane.b32.xlu0 %v1327, 96
    %v1334 = vpop.permute.xlu0 %1333
    %v1336 = vsel %vm62, %v1331, %v1334
    %v1338 = vsel %vm886, %v1336, 0
    %1340 = vmatpush.msra.mxu0 0.0
    %1341 = vmatpush.msra.mxu0 0.0
    %1342 = vmatpush.msra.mxu0 0.0
    %1343 = vmatpush.msra.mxu0 0.0
    %1344 = vmatpush.msra.mxu0 %v873
    %1345 = vmatpush.msra.mxu0 %v871
    %1346 = vmatpush.msra.mxu0 %v869
    %1347 = vmatpush.msra.mxu0 %v867
    %1348 = vmatpush.msra.mxu0 %v865
    %1349 = vmatpush.msra.mxu0 %v863
    %1350 = vmatpush.msra.mxu0 %v861
    %1351 = vmatpush.msra.mxu0 %v859
    %1352 = vmatpush.msra.mxu0 %v857
    %1353 = vmatpush.msra.mxu0 %v855
    %1354 = vmatpush.msra.mxu0 %v853
    %1355 = vmatpush.msra.mxu0 %v851
    %1356 = vmatmul.f32.gmra.mxu0 %v1338
    %v1357 = vpop.f32.mrf.mxu0
    %v1358 = vadd.f32 %v882, %v1357
    %1359 = vdwg.mxu0
    %1360 = vmatpush.msra.mxu0 0.0
    %1361 = vmatpush.msra.mxu0 0.0
    %1362 = vmatpush.msra.mxu0 0.0
    %1363 = vmatpush.msra.mxu0 0.0
    %1364 = vmatpush.msra.mxu0 %v874
    %1365 = vmatpush.msra.mxu0 %v872
    %1366 = vmatpush.msra.mxu0 %v870
    %1367 = vmatpush.msra.mxu0 %v868
    %1368 = vmatpush.msra.mxu0 %v866
    %1369 = vmatpush.msra.mxu0 %v864
    %1370 = vmatpush.msra.mxu0 %v862
    %1371 = vmatpush.msra.mxu0 %v860
    %1372 = vmatpush.msra.mxu0 %v858
    %1373 = vmatpush.msra.mxu0 %v856
    %1374 = vmatpush.msra.mxu0 %v854
    %1375 = vmatpush.msra.mxu0 %v852
    %1376 = vmatmul.f32.gmra.mxu0 %v1338
    %v1377 = vpop.f32.mrf.mxu0
    %v1378 = vadd.f32 %v883, %v1377
    %1379 = vdwg.mxu0
    %v1380 = vsel %vm53, %v1358, %v1378
    %v1381 = vxor.u32 %v1380, 2147483648
    %v1382 = vmul.f32 %v1381, 1.442695
    %v1383 = vpow.pop %v1382
    %v1384 = vadd.f32 %v1383, 1.0
    %v1385 = vrcp.pop %v1384
    %v1386 = vmul.f32 %v1384, %v1385
    %v1387 = vsub.f32 1.0, %v1386
    %v1388 = vmul.f32 %v1385, %v1387
    %v1389 = vadd.f32 %v1385, %v1388
    %vm1390 = vweird.f32 %v1384
    %vm1391 = vweird.f32 %v1385
    %vm1392 = vmor %vm1390, %vm1391
    %v1393 = vsel %vm1392, %v1385, %v1389
    %v1394 = vand.u32 2147483647, %v1384
    %vm1395 = vcmp.eq.f32.partialorder %v1394, 8.507059e+37
    %v1396 = vand.u32 %v1384, 2147483648
    %v1397 = vor.u32 1.1754944e-38, %v1396
    %v1398 = vsel %vm1395, %v1397, %v1393
    %v1399 = vmul.f32 1.0, %v1398
    %v1400 = vtanh.pop %v1380
    %v1401 = vmul.f32 %v1399, %v1321
    %1403 = vrot.lane.b32.xlu0 %v1400, 64
    %v1404 = vpop.permute.xlu0 %1403
    %v1406 = vmul.f32 %v1399, %v1404
    %1408 = vrot.lane.b32.xlu0 %v1406, 32
    %v1409 = vpop.permute.xlu0 %1408
    %v1411 = vadd.f32 %v1401, %v1409
    %v1412 = vtanh.pop %v1411
    %1414 = vrot.lane.b32.xlu0 %v1412, 64
    %v1415 = vpop.permute.xlu0 %1414
    %v1417 = vmul.f32 %v1399, %v1415
    %v1419 = vrot.slane %v844, 7
    %v1421 = vsel %vm53, %v849, %v1419
    %1423 = vrot.lane.b32.xlu0 %v1417, 96
    %v1424 = vpop.permute.xlu0 %1423
    %v1426 = vsel %vm62, %v1421, %v1424
    %v1428 = vsel %vm886, %v1426, 0
    %1430 = vmatpush.msra.mxu0 0.0
    %1431 = vmatpush.msra.mxu0 0.0
    %1432 = vmatpush.msra.mxu0 0.0
    %1433 = vmatpush.msra.mxu0 0.0
    %1434 = vmatpush.msra.mxu0 %v873
    %1435 = vmatpush.msra.mxu0 %v871
    %1436 = vmatpush.msra.mxu0 %v869
    %1437 = vmatpush.msra.mxu0 %v867
    %1438 = vmatpush.msra.mxu0 %v865
    %1439 = vmatpush.msra.mxu0 %v863
    %1440 = vmatpush.msra.mxu0 %v861
    %1441 = vmatpush.msra.mxu0 %v859
    %1442 = vmatpush.msra.mxu0 %v857
    %1443 = vmatpush.msra.mxu0 %v855
    %1444 = vmatpush.msra.mxu0 %v853
    %1445 = vmatpush.msra.mxu0 %v851
    %1446 = vmatmul.f32.gmra.mxu0 %v1428
    %v1447 = vpop.f32.mrf.mxu0
    %v1448 = vadd.f32 %v882, %v1447
    %1449 = vdwg.mxu0
    %1450 = vmatpush.msra.mxu0 0.0
    %1451 = vmatpush.msra.mxu0 0.0
    %1452 = vmatpush.msra.mxu0 0.0
    %1453 = vmatpush.msra.mxu0 0.0
    %1454 = vmatpush.msra.mxu0 %v874
    %1455 = vmatpush.msra.mxu0 %v872
    %1456 = vmatpush.msra.mxu0 %v870
    %1457 = vmatpush.msra.mxu0 %v868
    %1458 = vmatpush.msra.mxu0 %v866
    %1459 = vmatpush.msra.mxu0 %v864
    %1460 = vmatpush.msra.mxu0 %v862
    %1461 = vmatpush.msra.mxu0 %v860
    %1462 = vmatpush.msra.mxu0 %v858
    %1463 = vmatpush.msra.mxu0 %v856
    %1464 = vmatpush.msra.mxu0 %v854
    %1465 = vmatpush.msra.mxu0 %v852
    %1466 = vmatmul.f32.gmra.mxu0 %v1428
    %v1467 = vpop.f32.mrf.mxu0
    %v1468 = vadd.f32 %v883, %v1467
    %1469 = vdwg.mxu0
    %v1470 = vsel %vm53, %v1448, %v1468
    %v1471 = vxor.u32 %v1470, 2147483648
    %v1472 = vmul.f32 %v1471, 1.442695
    %v1473 = vpow.pop %v1472
    %v1474 = vadd.f32 %v1473, 1.0
    %v1475 = vrcp.pop %v1474
    %v1476 = vmul.f32 %v1474, %v1475
    %v1477 = vsub.f32 1.0, %v1476
    %v1478 = vmul.f32 %v1475, %v1477
    %v1479 = vadd.f32 %v1475, %v1478
    %vm1480 = vweird.f32 %v1474
    %vm1481 = vweird.f32 %v1475
    %vm1482 = vmor %vm1480, %vm1481
    %v1483 = vsel %vm1482, %v1475, %v1479
    %v1484 = vand.u32 2147483647, %v1474
    %vm1485 = vcmp.eq.f32.partialorder %v1484, 8.507059e+37
    %v1486 = vand.u32 %v1474, 2147483648
    %v1487 = vor.u32 1.1754944e-38, %v1486
    %v1488 = vsel %vm1485, %v1487, %v1483
    %v1489 = vmul.f32 1.0, %v1488
    %v1490 = vtanh.pop %v1470
    %v1491 = vmul.f32 %v1489, %v1411
    %1493 = vrot.lane.b32.xlu0 %v1490, 64
    %v1494 = vpop.permute.xlu0 %1493
    %v1496 = vmul.f32 %v1489, %v1494
    %1498 = vrot.lane.b32.xlu0 %v1496, 32
    %v1499 = vpop.permute.xlu0 %1498
    %v1501 = vadd.f32 %v1491, %v1499
    %v1502 = vtanh.pop %v1501
    %1504 = vrot.lane.b32.xlu0 %v1502, 64
    %v1505 = vpop.permute.xlu0 %1504
    %v1507 = vmul.f32 %v1489, %v1505
    %v1509 = vrot.slane %v843, 7
    %v1511 = vsel %vm53, %v850, %v1509
    %1513 = vrot.lane.b32.xlu0 %v1507, 96
    %v1514 = vpop.permute.xlu0 %1513
    %v1516 = vsel %vm62, %v1511, %v1514
    %v1518 = vsel %vm886, %v1516, 0
    %1520 = vmatpush.msra.mxu0 0.0
    %1521 = vmatpush.msra.mxu0 0.0
    %1522 = vmatpush.msra.mxu0 0.0
    %1523 = vmatpush.msra.mxu0 0.0
    %1524 = vmatpush.msra.mxu0 %v873
    %1525 = vmatpush.msra.mxu0 %v871
    %1526 = vmatpush.msra.mxu0 %v869
    %1527 = vmatpush.msra.mxu0 %v867
    %1528 = vmatpush.msra.mxu0 %v865
    %1529 = vmatpush.msra.mxu0 %v863
    %1530 = vmatpush.msra.mxu0 %v861
    %1531 = vmatpush.msra.mxu0 %v859
    %1532 = vmatpush.msra.mxu0 %v857
    %1533 = vmatpush.msra.mxu0 %v855
    %1534 = vmatpush.msra.mxu0 %v853
    %1535 = vmatpush.msra.mxu0 %v851
    %1536 = vmatmul.f32.gmra.mxu0 %v1518
    %v1537 = vpop.f32.mrf.mxu0
    %v1538 = vadd.f32 %v882, %v1537
    %1539 = vdwg.mxu0
    %1540 = vmatpush.msra.mxu0 0.0
    %1541 = vmatpush.msra.mxu0 0.0
    %1542 = vmatpush.msra.mxu0 0.0
    %1543 = vmatpush.msra.mxu0 0.0
    %1544 = vmatpush.msra.mxu0 %v874
    %1545 = vmatpush.msra.mxu0 %v872
    %1546 = vmatpush.msra.mxu0 %v870
    %1547 = vmatpush.msra.mxu0 %v868
    %1548 = vmatpush.msra.mxu0 %v866
    %1549 = vmatpush.msra.mxu0 %v864
    %1550 = vmatpush.msra.mxu0 %v862
    %1551 = vmatpush.msra.mxu0 %v860
    %1552 = vmatpush.msra.mxu0 %v858
    %1553 = vmatpush.msra.mxu0 %v856
    %1554 = vmatpush.msra.mxu0 %v854
    %1555 = vmatpush.msra.mxu0 %v852
    %1556 = vmatmul.f32.gmra.mxu0 %v1518
    %v1557 = vpop.f32.mrf.mxu0
    %v1558 = vadd.f32 %v883, %v1557
    %1559 = vdwg.mxu0
    %v1560 = vsel %vm53, %v1538, %v1558
    %v1561 = vxor.u32 %v1560, 2147483648
    %v1562 = vmul.f32 %v1561, 1.442695
    %v1563 = vpow.pop %v1562
    %v1564 = vadd.f32 %v1563, 1.0
    %v1565 = vrcp.pop %v1564
    %v1566 = vmul.f32 %v1564, %v1565
    %v1567 = vsub.f32 1.0, %v1566
    %v1568 = vmul.f32 %v1565, %v1567
    %v1569 = vadd.f32 %v1565, %v1568
    %vm1570 = vweird.f32 %v1564
    %vm1571 = vweird.f32 %v1565
    %vm1572 = vmor %vm1570, %vm1571
    %v1573 = vsel %vm1572, %v1565, %v1569
    %v1574 = vand.u32 2147483647, %v1564
    %vm1575 = vcmp.eq.f32.partialorder %v1574, 8.507059e+37
    %v1576 = vand.u32 %v1564, 2147483648
    %v1577 = vor.u32 1.1754944e-38, %v1576
    %v1578 = vsel %vm1575, %v1577, %v1573
    %v1579 = vmul.f32 1.0, %v1578
    %v1580 = vtanh.pop %v1560
    %v1581 = vmul.f32 %v1579, %v1501
    %1583 = vrot.lane.b32.xlu0 %v1580, 64
    %v1584 = vpop.permute.xlu0 %1583
    %v1586 = vmul.f32 %v1579, %v1584
    %1588 = vrot.lane.b32.xlu0 %v1586, 32
    %v1589 = vpop.permute.xlu0 %1588
    %v1591 = vadd.f32 %v1581, %v1589
    %v1592 = vtanh.pop %v1591
    %1594 = vrot.lane.b32.xlu0 %v1592, 64
    %v1595 = vpop.permute.xlu0 %1594
    %v1597 = vmul.f32 %v1579, %v1595
    %1599 = vrot.lane.b32.xlu0 %v1597, 32
    %v1600 = vpop.permute.xlu0 %1599
    %s1602 = scalar_lea.vmem [#allocation4], 2
    %1603 = vst.msk [vmem:[%s1602] sm:$0x1] %vm778, %v1600
    %s1604 = scalar_lea.vmem [#allocation4], 3
    %1605 = vst.msk [vmem:[%s1604 - $0x1] sm:$0x2] %vm781, %v1600
    %1607 = vrot.lane.b32.xlu0 %v1591, 96
    %v1608 = vpop.permute.xlu0 %1607
    %s1610 = scalar_lea.vmem [#allocation6], 2
    %1611 = vst.msk [vmem:[%s1610] sm:$0x1] %vm778, %v1608
    %s1612 = scalar_lea.vmem [#allocation6], 3
    %1613 = vst.msk [vmem:[%s1612 - $0x1] sm:$0x2] %vm781, %v1608
    %1614 = vrot.lane.b32.xlu0 %v967, 32
    %v1615 = vpop.permute.xlu0 %1614
    %1616 = vrot.lane.b32.xlu0 %v1057, 32
    %v1617 = vpop.permute.xlu0 %1616
    %1618 = vrot.lane.b32.xlu0 %v1147, 32
    %v1619 = vpop.permute.xlu0 %1618
    %1620 = vrot.lane.b32.xlu0 %v1237, 32
    %v1621 = vpop.permute.xlu0 %1620
    %1622 = vrot.lane.b32.xlu0 %v1327, 32
    %v1623 = vpop.permute.xlu0 %1622
    %1624 = vrot.lane.b32.xlu0 %v1417, 32
    %v1625 = vpop.permute.xlu0 %1624
    %1626 = vrot.lane.b32.xlu0 %v1507, 32
    %v1627 = vpop.permute.xlu0 %1626
    %v1635 = vrot.slane %v1597, 1
    %v1636 = vrot.slane %v1507, 1
    %v1637 = vrot.slane %v1417, 1
    %v1638 = vrot.slane %v1327, 1
    %v1639 = vrot.slane %v1237, 1
    %v1640 = vrot.slane %v1147, 1
    %v1641 = vrot.slane %v1057, 1
    %v1642 = vrot.slane %v967, 1
    %1643 = vrot.lane.b32.xlu0 %v1635, 64
    %v1644 = vpop.permute.xlu0 %1643
    %1645 = vrot.lane.b32.xlu0 %v1636, 64
    %v1646 = vpop.permute.xlu0 %1645
    %1647 = vrot.lane.b32.xlu0 %v1637, 64
    %v1648 = vpop.permute.xlu0 %1647
    %1649 = vrot.lane.b32.xlu0 %v1638, 64
    %v1650 = vpop.permute.xlu0 %1649
    %1651 = vrot.lane.b32.xlu0 %v1639, 64
    %v1652 = vpop.permute.xlu0 %1651
    %1653 = vrot.lane.b32.xlu0 %v1640, 64
    %v1654 = vpop.permute.xlu0 %1653
    %1655 = vrot.lane.b32.xlu0 %v1641, 64
    %v1656 = vpop.permute.xlu0 %1655
    %1657 = vrot.lane.b32.xlu0 %v1642, 64
    %v1658 = vpop.permute.xlu0 %1657
    %v1667 = vsel %vm55, %v1615, %v1644
    %v1668 = vsel %vm55, %v1617, %v1646
    %v1669 = vsel %vm55, %v1619, %v1648
    %v1670 = vsel %vm55, %v1621, %v1650
    %v1671 = vsel %vm55, %v1623, %v1652
    %v1672 = vsel %vm55, %v1625, %v1654
    %v1673 = vsel %vm55, %v1627, %v1656
    %v1674 = vsel %vm55, %v1600, %v1658
    %1683 = vrot.lane.b32.xlu0 %v1667, 96
    %v1684 = vpop.permute.xlu0 %1683
    %1685 = vrot.lane.b32.xlu0 %v1668, 96
    %v1686 = vpop.permute.xlu0 %1685
    %1687 = vrot.lane.b32.xlu0 %v1669, 96
    %v1688 = vpop.permute.xlu0 %1687
    %1689 = vrot.lane.b32.xlu0 %v1670, 96
    %v1690 = vpop.permute.xlu0 %1689
    %1691 = vrot.lane.b32.xlu0 %v1671, 96
    %v1692 = vpop.permute.xlu0 %1691
    %1693 = vrot.lane.b32.xlu0 %v1672, 96
    %v1694 = vpop.permute.xlu0 %1693
    %1695 = vrot.lane.b32.xlu0 %v1673, 96
    %v1696 = vpop.permute.xlu0 %1695
    %1697 = vrot.lane.b32.xlu0 %v1674, 96
    %v1698 = vpop.permute.xlu0 %1697
    %v1707 = vadd.f32 %v1667, %v1684
    %v1708 = vadd.f32 %v1668, %v1686
    %v1709 = vadd.f32 %v1669, %v1688
    %v1710 = vadd.f32 %v1670, %v1690
    %v1711 = vadd.f32 %v1671, %v1692
    %v1712 = vadd.f32 %v1672, %v1694
    %v1713 = vadd.f32 %v1673, %v1696
    %v1714 = vadd.f32 %v1674, %v1698
    %v1715 = vadd.f32 %v1707, %v25
    %v1716 = vadd.f32 %v1708, %v26
    %v1717 = vadd.f32 %v1709, %v27
    %v1718 = vadd.f32 %v1710, %v28
    %v1719 = vadd.f32 %v1711, %v29
    %v1720 = vadd.f32 %v1712, %v30
    %v1721 = vadd.f32 %v1713, %v31
    %v1722 = vadd.f32 %v1714, %v32
    %1723 = vst.msk [vmem:[#allocation2] sm:$0x1] %vm778, %v1715
    %1724 = vst.msk [vmem:[#allocation2 + $0x1] sm:$0x1] %vm778, %v1716
    %1725 = vst.msk [vmem:[#allocation2 + $0x2] sm:$0x1] %vm778, %v1717
    %1726 = vst.msk [vmem:[#allocation2 + $0x3] sm:$0x1] %vm778, %v1718
    %1727 = vst.msk [vmem:[#allocation2 + $0x4] sm:$0x1] %vm778, %v1719
    %1728 = vst.msk [vmem:[#allocation2 + $0x5] sm:$0x1] %vm778, %v1720
    %1729 = vst.msk [vmem:[#allocation2 + $0x6] sm:$0x1] %vm778, %v1721
    %1730 = vst.msk [vmem:[#allocation2 + $0x7] sm:$0x1] %vm778, %v1722
    // Predicated region
    $region22: #{bidirectional_lstm_forward.1} parent=1 // pred_check
      _
    $region23: #{bidirectional_lstm_forward.1} parent=1 // pred_check_branch
      %1732 = sbr.rel (0) target = $region25
    $region24: #{bidirectional_lstm_forward.1} parent=1 // pred_region
      %1734 = vsyncadd [#allocation3], 0
      %s1735 = sshll.u32 [#allocation2], 4
      %s1736 = int_to_ptr.vmem [resolvable:$true] %s1735
      %s1737 = sshll.u32 %s5, 4
      %s1738 = int_to_ptr.hbm [resolvable:$true] %s1737
      %1743 = dma.vmem_to_hbm [thread:$0]  %s1736, 128, %s1738, [#allocation3], 16, 16, 1
    $region25: #{bidirectional_lstm_forward.1} parent=1 // pred_fallthru
      _
    // Predicated region
    $region26: #{bidirectional_lstm_forward.1} parent=1 // pred_check
      _
    $region27: #{bidirectional_lstm_forward.1} parent=1 // pred_check_branch
      %1745 = sbr.rel (0) target = $region29
    $region28: #{bidirectional_lstm_forward.1} parent=1 // pred_region
      %1747 = vsyncadd [#allocation5], 0
      %s1748 = sshll.u32 [#allocation4], 4
      %s1749 = int_to_ptr.vmem [resolvable:$true] %s1748
      %s1750 = sshll.u32 %s6, 4
      %s1751 = int_to_ptr.hbm [resolvable:$true] %s1750
      %1756 = dma.vmem_to_hbm [thread:$0]  %s1749, 64, %s1751, [#allocation5], 16, 16, 1
    $region29: #{bidirectional_lstm_forward.1} parent=1 // pred_fallthru
      _
    // Predicated region
    $region30: #{bidirectional_lstm_forward.1} parent=1 // pred_check
      _
    $region31: #{bidirectional_lstm_forward.1} parent=1 // pred_check_branch
      %1758 = sbr.rel (0) target = $region33
    $region32: #{bidirectional_lstm_forward.1} parent=1 // pred_region
      %1760 = vsyncadd [#allocation5], 0
      %s1761 = sshll.u32 [#allocation6], 4
      %s1762 = int_to_ptr.vmem [resolvable:$true] %s1761
      %s1763 = sshll.u32 %s7, 4
      %s1764 = int_to_ptr.hbm [resolvable:$true] %s1763
      %1769 = dma.vmem_to_hbm [thread:$0]  %s1762, 64, %s1764, [#allocation5], 16, 16, 1
    $region33: #{bidirectional_lstm_forward.1} parent=1 // pred_fallthru
      _
    // Predicated region
    $region34: #{bidirectional_lstm_forward.1} parent=1 // pred_check
      _
    $region35: #{bidirectional_lstm_forward.1} parent=1 // pred_check_branch
      %1771 = sbr.rel (0) target = $region37
    $region36: #{bidirectional_lstm_forward.1} parent=1 // pred_region
      %1773 = dma.done [#allocation3], 128
    $region37: #{bidirectional_lstm_forward.1} parent=1 // pred_fallthru
      _
    // Predicated region
    $region38: #{bidirectional_lstm_forward.1} parent=1 // pred_check
      _
    $region39: #{bidirectional_lstm_forward.1} parent=1 // pred_check_branch
      %1775 = sbr.rel (0) target = $region41
    $region40: #{bidirectional_lstm_forward.1} parent=1 // pred_region
      %1777 = dma.done [#allocation5], 64
    $region41: #{bidirectional_lstm_forward.1} parent=1 // pred_fallthru
      _
    // Predicated region
    $region42: #{bidirectional_lstm_forward.1} parent=1 // pred_check
      _
    $region43: #{bidirectional_lstm_forward.1} parent=1 // pred_check_branch
      %1779 = sbr.rel (0) target = $region45
    $region44: #{bidirectional_lstm_forward.1} parent=1 // pred_region
      %1781 = dma.done [#allocation5], 64
    $region45: #{bidirectional_lstm_forward.1} parent=1 // pred_fallthru
      _
    %1782 = vsyncpa [#allocation3], 1
    %1783 = vsyncpa [#allocation5], 1

</llo_original>
